<compile_context>
chip_gen: v5e
topology: v5e:2x2
jax: 0.10.0
libtpu: 0.0.40
codegen_flags: <defaults>
</compile_context>

<pallas_src>
import functools
from dataclasses import dataclass

import jax
import jax.numpy as jnp
from jax.experimental import pallas as pl
from jax.experimental.pallas import tpu as pltpu


# --------------------------- Pallas kernels ---------------------------------

def _layers_kernel(x_ref, cos_ref, sin_ref, mask_ref,
                   ln1_ref, ln2_ref, wqkv_ref, wo_ref, w13_ref, w2_ref,
                   xo_ref, ok_ref, ov_ref,
                   resid_ref, attn_ref,
                   *, n_head, n_kv_head, head_dim, inter_size, eps):
    """One grid step == one SimBlock (attention + MLP), fully in VMEM."""
    H, KVH, D, F = n_head, n_kv_head, head_dim, inter_size
    rep = H // KVH
    HD, KD = H * D, KVH * D

    l = pl.program_id(0)
    n_layers = pl.num_programs(0)

    # Layer 0: load the embedding activations into the VMEM-resident residual.
    @pl.when(l == 0)
    def _():
        resid_ref[...] = x_ref[...]

    x = resid_ref[...]                          # (T, C) f32 residual stream
    cos = cos_ref[...]                          # (T, H*D) (tiled per head)
    sin = sin_ref[...]                          # (T, H*D) (first half of each head pre-negated)
    mask = mask_ref[...]                        # (T, T)   additive causal mask

    def rmsnorm(v, w):
        var = jnp.mean(v * v, axis=-1, keepdims=True)
        return v * jax.lax.rsqrt(var + eps) * w

    # ---------------- attention sub-block ---------------------------------
    y_bf = rmsnorm(x, ln1_ref[0]).astype(jnp.bfloat16)

    # One fused MXU matmul for [q | q_rot | k | k_rot | v] (rotate-half is
    # folded into the extra weight columns at init time).
    qkv = jnp.dot(y_bf, wqkv_ref[0],
                  preferred_element_type=jnp.float32)        # (T, 2HD+3KD) f32
    q   = qkv[:, 0:HD]
    q_r = qkv[:, HD:2 * HD]
    k   = qkv[:, 2 * HD:2 * HD + KD]
    k_r = qkv[:, 2 * HD + KD:2 * HD + 2 * KD]
    v   = qkv[:, 2 * HD + 2 * KD:2 * HD + 3 * KD]

    # RoPE: purely elementwise (VPU).
    q = q * cos + q_r * sin                                  # (T, H*D)
    k = k * cos[:, :KD] + k_r * sin[:, :KD]                  # (T, KVH*D)

    # Lane-dense per-layer KV outputs (wrapper reshapes to (KVH, T, D)).
    ok_ref[0] = k
    ov_ref[0] = v

    # Head-batched attention (GQA: query head h reuses kv head h // rep).
    q3 = jnp.stack([q[:, h * D:(h + 1) * D] for h in range(H)],
                   axis=0).astype(jnp.bfloat16)              # (H, T, D)
    k3 = jnp.stack([k[:, (h // rep) * D:(h // rep + 1) * D] for h in range(H)],
                   axis=0).astype(jnp.bfloat16)              # (H, T, D)
    v3 = jnp.stack([v[:, (h // rep) * D:(h // rep + 1) * D] for h in range(H)],
                   axis=0).astype(jnp.bfloat16)              # (H, T, D)

    # NOTE: no 1/sqrt(head_dim) scaling -- matches the reference module.
    s = jax.lax.dot_general(q3, k3, (((2,), (2,)), ((0,), (0,))),
                            preferred_element_type=jnp.float32)   # (H, T, T)
    s = s + mask
    s = s - jnp.max(s, axis=-1, keepdims=True)
    p = jnp.exp(s)
    p = p / jnp.sum(p, axis=-1, keepdims=True)   # exact softmax (matches torch)
    o3 = jax.lax.dot_general(p.astype(jnp.bfloat16), v3,
                             (((2,), (1,)), ((0,), (0,))),
                             preferred_element_type=jnp.float32)  # (H, T, D)

    # Re-pack heads lane-dense into (T, H*D) and run ONE o_proj matmul.
    for h in range(H):
        attn_ref[:, h * D:(h + 1) * D] = o3[h]
    attn_out = jnp.dot(attn_ref[...].astype(jnp.bfloat16), wo_ref[0],
                       preferred_element_type=jnp.float32)        # (T, C)

    x1 = x + attn_out                            # residual 1 (f32)

    # ---------------- MLP sub-block ---------------------------------------
    y2 = rmsnorm(x1, ln2_ref[0]).astype(jnp.bfloat16)
    ab = jnp.dot(y2, w13_ref[0], preferred_element_type=jnp.float32)  # (T, 2F)
    a, b = ab[:, :F], ab[:, F:]
    g = (a * jax.nn.sigmoid(a)) * b                                   # SiLU gate
    mlp = jnp.dot(g.astype(jnp.bfloat16), w2_ref[0],
                  preferred_element_type=jnp.float32)                 # (T, C)

    x2 = x1 + mlp                                # residual 2 (f32)
    resid_ref[...] = x2

    @pl.when(l == n_layers - 1)
    def _():
        xo_ref[...] = x2


def transformer_layers(x, cos_q, sin_q, mask, stacked, cfg):
    """All SimBlocks in one pallas_call; weights streamed per grid step."""
    T, C = x.shape
    L = cfg.n_layer
    H, KVH, D, F = cfg.n_head, cfg.n_kv_head, cfg.head_dim, cfg.intermediate_size
    HD, KD = H * D, KVH * D
    NQKV = 2 * HD + 3 * KD

    kernel = functools.partial(_layers_kernel, n_head=H, n_kv_head=KVH,
                               head_dim=D, inter_size=F, eps=cfg.norm_eps)
    fixed2 = lambda l: (0, 0)
    perlayer3 = lambda l: (l, 0, 0)

    return pl.pallas_call(
        kernel,
        out_shape=(jax.ShapeDtypeStruct((T, C), jnp.float32),      # final hidden
                   jax.ShapeDtypeStruct((L, T, KD), jnp.float32),  # K per layer
                   jax.ShapeDtypeStruct((L, T, KD), jnp.float32)), # V per layer
        grid=(L,),
        in_specs=[pl.BlockSpec((T, C), fixed2),            # embeddings
                  pl.BlockSpec((T, HD), fixed2),           # cos, tiled to H*D lanes
                  pl.BlockSpec((T, HD), fixed2),           # sin, tiled to H*D lanes
                  pl.BlockSpec((T, T), fixed2),            # additive causal mask
                  pl.BlockSpec((1, 1, C), perlayer3),      # input_layernorm
                  pl.BlockSpec((1, 1, C), perlayer3),      # post_attention_layernorm
                  pl.BlockSpec((1, C, NQKV), perlayer3),   # fused [q|q_rot|k|k_rot|v] bf16
                  pl.BlockSpec((1, HD, C), perlayer3),     # o_proj bf16
                  pl.BlockSpec((1, C, 2 * F), perlayer3),  # fused [w1|w3] bf16
                  pl.BlockSpec((1, F, C), perlayer3)],     # w2 bf16
        out_specs=(pl.BlockSpec((T, C), fixed2),
                   pl.BlockSpec((1, T, KD), perlayer3),
                   pl.BlockSpec((1, T, KD), perlayer3)),
        scratch_shapes=[pltpu.VMEM((T, C), jnp.float32),   # residual stream carrier
                        pltpu.VMEM((T, HD), jnp.float32)], # lane-packed attention out
        compiler_params=pltpu.CompilerParams(
            dimension_semantics=("arbitrary",),            # layers are sequential
            vmem_limit_bytes=32 * 1024 * 1024),
    )(x, cos_q, sin_q, mask,
      stacked["ln1"], stacked["ln2"], stacked["wqkv"], stacked["wo"],
      stacked["w13"], stacked["w2"])


def _head_kernel(x_ref, nw_ref, wt_ref, o_ref, *, eps):
    x = x_ref[...]
    var = jnp.mean(x * x, axis=-1, keepdims=True)
    y = (x * jax.lax.rsqrt(var + eps) * nw_ref[...]).astype(jnp.bfloat16)
    o_ref[...] = jnp.dot(y, wt_ref[...], preferred_element_type=jnp.float32)


def _vocab_tile(V, max_tile=4096):
    """Largest multiple-of-128 divisor of V up to max_tile (or V itself)."""
    if V <= max_tile:
        return V
    cands = [t for t in range(128, max_tile + 1, 128) if V % t == 0]
    return max(cands) if cands else V


def norm_lm_head(x, norm_w, lm_head_t, eps):
    """Fused final RMSNorm + lm_head projection, vocab axis tiled & parallel."""
    T, C = x.shape
    V = lm_head_t.shape[1]
    tile_v = _vocab_tile(V)
    return pl.pallas_call(
        functools.partial(_head_kernel, eps=eps),
        out_shape=jax.ShapeDtypeStruct((T, V), jnp.float32),
        grid=(V // tile_v,),
        in_specs=[pl.BlockSpec((T, C), lambda j: (0, 0)),
                  pl.BlockSpec((1, C), lambda j: (0, 0)),
                  pl.BlockSpec((C, tile_v), lambda j: (0, j))],
        out_specs=pl.BlockSpec((T, tile_v), lambda j: (0, j)),
        compiler_params=pltpu.CompilerParams(
            dimension_semantics=("parallel",),
            vmem_limit_bytes=32 * 1024 * 1024),
    )(x, norm_w, lm_head_t)


# --------------------------- Model glue --------------------------------------

@dataclass
class SimConfig:
    block_size: int = 16
    vocab_size: int = 64
    n_layer: int = 2
    n_head: int = 4
    n_kv_head: int = 2
    n_embd: int = 32
    head_dim: int = 8          # n_embd // n_head (SimAttention overrides it)
    intermediate_size: int = 64
    norm_eps: float = 1e-5
    neg_inf: float = -40000.0


def build_rope_cache(seq_len, n_elem, base=10000.0):
    theta = 1.0 / (base ** (jnp.arange(0, n_elem, 2, dtype=jnp.float32) / n_elem))
    seq_idx = jnp.arange(seq_len, dtype=jnp.float32)
    idx_theta = jnp.outer(seq_idx, theta)          # (seq_len, n_elem//2)
    idx_theta = jnp.tile(idx_theta, (1, 2))        # torch .repeat(1, 2)
    cos = jnp.cos(idx_theta)
    sin = jnp.sin(idx_theta)
    sin = sin.at[:, : n_elem // 2].multiply(-1.0)  # pre-negated first half
    return cos, sin


def make_attention_mask(T, neg_inf):
    """SimModel._make_causal_mask scaled by neg_inf: 0 on/below diag, neg_inf above."""
    causal = jnp.tril(jnp.ones((T, T), jnp.float32))
    mask = jnp.where(causal == 0.0, 1.0, 0.0) * neg_inf
    return mask[None]          # (1, T, T)


def init_params(cfg: SimConfig, key):
    """Weights generated in torch (Cout, Cin) layout, then pre-transposed,
    fused (QKV + folded RoPE columns, w1/w3), stacked across layers and cast
    to bf16 once at init -- no per-call transposes or per-head weight stacks."""
    cfg.head_dim = cfg.n_embd // cfg.n_head
    H, KVH, D = cfg.n_head, cfg.n_kv_head, cfg.head_dim
    C, F, L, V = cfg.n_embd, cfg.intermediate_size, cfg.n_layer, cfg.vocab_size
    HD, KD = H * D, KVH * D

    keys = iter(jax.random.split(key, 4 + 7 * L))
    scale = 0.02

    def w(shape):
        return scale * jax.random.normal(next(keys), shape, dtype=jnp.float32)

    # rotate-half permutation: (x @ rot)[:, j] = x[:, (j + D//2) % D]
    rot = jnp.roll(jnp.eye(D, dtype=jnp.float32), D // 2, axis=0)

    def fold_rot(w_t, n_heads):            # (C, n_heads*D): permute columns per head
        w3 = w_t.reshape(C, n_heads, D)
        return jnp.einsum('chd,de->che', w3, rot).reshape(C, n_heads * D)

    ln1, ln2, wqkv, wo, w13, w2 = [], [], [], [], [], []
    for _ in range(L):
        wq_t = w((HD, C)).T                # torch (out, in) -> (in, out)
        wk_t = w((KD, C)).T
        wv_t = w((KD, C)).T
        wo_t = w((C, C)).T                 # (H*D, C), rows head-major
        w1_t = w((F, C)).T
        w3_t = w((F, C)).T
        w2_t = w((C, F)).T                 # (F, C)
        wqkv.append(jnp.concatenate(
            [wq_t, fold_rot(wq_t, H), wk_t, fold_rot(wk_t, KVH), wv_t], axis=1))
        wo.append(wo_t)
        w13.append(jnp.concatenate([w1_t, w3_t], axis=1))
        w2.append(w2_t)
        ln1.append(jnp.ones((1, C), jnp.float32))
        ln2.append(jnp.ones((1, C), jnp.float32))

    params = {
        "embed_tokens": w((V, C)),
        "norm": jnp.ones((1, C), jnp.float32),
        # SLinear ≡ Linear (no bias): stored transposed (C, V) in bf16.
        "lm_head_t": w((V, C)).T.astype(jnp.bfloat16),
        "stacked": {
            "ln1":  jnp.stack(ln1, 0),                          # (L, 1, C) f32
            "ln2":  jnp.stack(ln2, 0),                          # (L, 1, C) f32
            "wqkv": jnp.stack(wqkv, 0).astype(jnp.bfloat16),    # (L, C, 2HD+3KD)
            "wo":   jnp.stack(wo, 0).astype(jnp.bfloat16),      # (L, HD, C)
            "w13":  jnp.stack(w13, 0).astype(jnp.bfloat16),     # (L, C, 2F)
            "w2":   jnp.stack(w2, 0).astype(jnp.bfloat16),      # (L, F, C)
        },
    }
    cos, sin = build_rope_cache(cfg.block_size, D)
    params["cos"], params["sin"] = cos, sin
    return params


def sim_model_forward(params, input_ids, attention_mask, position_ids, *, cfg):
    """Matches SimModel.forward (no KV cache): returns (logits, out_k, out_v)."""
    T = input_ids.shape[0]
    D, H, KVH, L = cfg.head_dim, cfg.n_head, cfg.n_kv_head, cfg.n_layer

    x = jnp.take(params["embed_tokens"], input_ids, axis=0)        # (T, C) gather
    cos = params["cos"][position_ids].reshape(T, D)
    sin = params["sin"][position_ids].reshape(T, D)
    cos_q = jnp.tile(cos, (1, H))                                   # (T, H*D)
    sin_q = jnp.tile(sin, (1, H))
    mask = attention_mask.reshape(T, T)

    xo, ok, ov = transformer_layers(x, cos_q, sin_q, mask, params["stacked"], cfg)

    # Lane-dense kernel outputs (L, T, KVH*D) -> reference layout (L, KVH, T, D).
    out_k = ok.reshape(L, T, KVH, D).transpose(0, 2, 1, 3)
    out_v = ov.reshape(L, T, KVH, D).transpose(0, 2, 1, 3)

    logits = norm_lm_head(xo, params["norm"], params["lm_head_t"], cfg.norm_eps)
    return logits, out_k, out_v


# --------------------------- Main ---------------------------------------------

if __name__ == "__main__":
    cfg = SimConfig()
    key = jax.random.PRNGKey(0)
    pkey, ikey = jax.random.split(key)
    params = init_params(cfg, pkey)

    T = 8
    input_ids = jax.random.randint(ikey, (T,), 0, cfg.vocab_size, dtype=jnp.int32)
    position_ids = jnp.arange(T, dtype=jnp.int32)
    attention_mask = make_attention_mask(T, cfg.neg_inf)            # (1, T, T)

    fwd = jax.jit(functools.partial(sim_model_forward, cfg=cfg))
    logits, out_k, out_v = fwd(params, input_ids, attention_mask, position_ids)
    jax.block_until_ready((logits, out_k, out_v))

    assert logits.shape == (T, cfg.vocab_size)
    assert out_k.shape == (cfg.n_layer, cfg.n_kv_head, T, cfg.head_dim)
    assert out_v.shape == (cfg.n_layer, cfg.n_kv_head, T, cfg.head_dim)
    assert bool(jnp.all(jnp.isfinite(logits)))
    assert bool(jnp.all(jnp.isfinite(out_k)))
    assert bool(jnp.all(jnp.isfinite(out_v)))
    print("KERNEL_OK")
</pallas_src>

<mosaic_0001>
module attributes {stable_mosaic.version = 11 : i64} {
  func.func @_head_kernel(%arg0: i32, %arg1: memref<8x32xf32, #tpu.memory_space<vmem>>, %arg2: memref<1x32xf32, #tpu.memory_space<vmem>>, %arg3: memref<32x64xbf16, #tpu.memory_space<vmem>>, %arg4: memref<8x64xf32, #tpu.memory_space<vmem>>) attributes {dimension_semantics = [#tpu.dimension_semantics<parallel>], iteration_bounds = array<i64: 1>, scalar_prefetch = 0 : i64, scratch_operands = 0 : i64, tpu.core_type = #tpu.core_type<tc>, window_params = [{pipeline_mode = #tpu.pipeline_mode<synchronous>, transform_indices = @transform_0, window_bounds = array<i64: 8, 32>}, {pipeline_mode = #tpu.pipeline_mode<synchronous>, transform_indices = @transform_1, window_bounds = array<i64: 1, 32>}, {transform_indices = @transform_2, window_bounds = array<i64: 32, 64>}, {transform_indices = @transform_3, window_bounds = array<i64: 8, 64>}]} {
    %c0 = arith.constant 0 : index
    %c0_0 = arith.constant 0 : index
    %0 = vector.load %arg1[%c0, %c0_0] : memref<8x32xf32, #tpu.memory_space<vmem>>, vector<8x32xf32>
    %1 = arith.mulf %0, %0 : vector<8x32xf32>
    %cst = arith.constant dense<0.000000e+00> : vector<8xf32>
    %2 = vector.multi_reduction <add>, %1, %cst [1] : vector<8x32xf32> to vector<8xf32>
    %3 = vector.shape_cast %2 : vector<8xf32> to vector<8x1xf32>
    %cst_1 = arith.constant 3.200000e+01 : f32
    %4 = vector.broadcast %cst_1 : f32 to vector<8x1xf32>
    %5 = arith.divf %3, %4 : vector<8x1xf32>
    %cst_2 = arith.constant 9.99999974E-6 : f32
    %6 = vector.broadcast %cst_2 : f32 to vector<8x1xf32>
    %7 = arith.addf %5, %6 : vector<8x1xf32>
    %8 = math.rsqrt %7 : vector<8x1xf32>
    %9 = vector.broadcast %8 : vector<8x1xf32> to vector<8x32xf32>
    %10 = arith.mulf %0, %9 : vector<8x32xf32>
    %c0_3 = arith.constant 0 : index
    %c0_4 = arith.constant 0 : index
    %11 = vector.load %arg2[%c0_3, %c0_4] : memref<1x32xf32, #tpu.memory_space<vmem>>, vector<1x32xf32>
    %12 = vector.broadcast %11 : vector<1x32xf32> to vector<8x32xf32>
    %13 = arith.mulf %10, %12 : vector<8x32xf32>
    %14 = arith.truncf %13 : vector<8x32xf32> to vector<8x32xbf16>
    %c0_5 = arith.constant 0 : index
    %c0_6 = arith.constant 0 : index
    %15 = vector.load %arg3[%c0_5, %c0_6] : memref<32x64xbf16, #tpu.memory_space<vmem>>, vector<32x64xbf16>
    %cst_7 = arith.constant dense<0.000000e+00> : vector<8x64xf32>
    %16 = tpu.matmul %14, %15, %cst_7 {dimension_numbers = #tpu.dot_dimension_numbers<[1], [0], [0], [1], [0, 0, 1, 1], [], []>} : vector<8x32xbf16>, vector<32x64xbf16>, vector<8x64xf32> -> vector<8x64xf32>
    %c0_8 = arith.constant 0 : index
    %c0_9 = arith.constant 0 : index
    %17 = vector.load %arg4[%c0_8, %c0_9] : memref<8x64xf32, #tpu.memory_space<vmem>>, vector<8x64xf32>
    tpu.vector_store %arg4[%c0_8, %c0_9], %16 {strides = array<i32>} : memref<8x64xf32, #tpu.memory_space<vmem>>, vector<8x64xf32>,
    return
  }
  func.func @transform_0(%arg0: i32) -> (i32, i32) {
    %c0_i32 = arith.constant 0 : i32
    %c0_i32_0 = arith.constant 0 : i32
    %c0_i32_1 = arith.constant 0 : i32
    return %c0_i32, %c0_i32_0 : i32, i32
  }
  func.func @transform_1(%arg0: i32) -> (i32, i32) {
    %c0_i32 = arith.constant 0 : i32
    %c0_i32_0 = arith.constant 0 : i32
    %c0_i32_1 = arith.constant 0 : i32
    return %c0_i32, %c0_i32_0 : i32, i32
  }
  func.func @transform_2(%arg0: i32) -> (i32, i32) {
    %c0_i32 = arith.constant 0 : i32
    %c0_i32_0 = arith.constant 0 : i32
    return %c0_i32, %arg0 : i32, i32
  }
  func.func @transform_3(%arg0: i32) -> (i32, i32) {
    %c0_i32 = arith.constant 0 : i32
    %c0_i32_0 = arith.constant 0 : i32
    return %c0_i32, %arg0 : i32, i32
  }
}

module attributes {stable_mosaic.version = 11 : i64} {
  func.func @_layers_kernel(%arg0: i32, %arg1: memref<8x32xf32, #tpu.memory_space<vmem>>, %arg2: memref<8x32xf32, #tpu.memory_space<vmem>>, %arg3: memref<8x32xf32, #tpu.memory_space<vmem>>, %arg4: memref<8x8xf32, #tpu.memory_space<vmem>>, %arg5: memref<1x1x32xf32, #tpu.memory_space<vmem>>, %arg6: memref<1x1x32xf32, #tpu.memory_space<vmem>>, %arg7: memref<1x32x112xbf16, #tpu.memory_space<vmem>>, %arg8: memref<1x32x32xbf16, #tpu.memory_space<vmem>>, %arg9: memref<1x32x128xbf16, #tpu.memory_space<vmem>>, %arg10: memref<1x64x32xbf16, #tpu.memory_space<vmem>>, %arg11: memref<8x32xf32, #tpu.memory_space<vmem>>, %arg12: memref<1x8x16xf32, #tpu.memory_space<vmem>>, %arg13: memref<1x8x16xf32, #tpu.memory_space<vmem>>, %arg14: memref<8x32xf32, #tpu.memory_space<vmem>>, %arg15: memref<8x32xf32, #tpu.memory_space<vmem>>) attributes {dimension_semantics = [#tpu.dimension_semantics<arbitrary>], iteration_bounds = array<i64: 2>, scalar_prefetch = 0 : i64, scratch_operands = 2 : i64, tpu.core_type = #tpu.core_type<tc>, window_params = [{pipeline_mode = #tpu.pipeline_mode<synchronous>, transform_indices = @transform_0, window_bounds = array<i64: 8, 32>}, {pipeline_mode = #tpu.pipeline_mode<synchronous>, transform_indices = @transform_1, window_bounds = array<i64: 8, 32>}, {pipeline_mode = #tpu.pipeline_mode<synchronous>, transform_indices = @transform_2, window_bounds = array<i64: 8, 32>}, {pipeline_mode = #tpu.pipeline_mode<synchronous>, transform_indices = @transform_3, window_bounds = array<i64: 8, 8>}, {transform_indices = @transform_4, window_bounds = array<i64: 1, 1, 32>}, {transform_indices = @transform_5, window_bounds = array<i64: 1, 1, 32>}, {transform_indices = @transform_6, window_bounds = array<i64: 1, 32, 112>}, {transform_indices = @transform_7, window_bounds = array<i64: 1, 32, 32>}, {transform_indices = @transform_8, window_bounds = array<i64: 1, 32, 128>}, {transform_indices = @transform_9, window_bounds = array<i64: 1, 64, 32>}, {pipeline_mode = #tpu.pipeline_mode<synchronous>, transform_indices = @transform_10, window_bounds = array<i64: 8, 32>}, {transform_indices = @transform_11, window_bounds = array<i64: 1, 8, 16>}, {transform_indices = @transform_12, window_bounds = array<i64: 1, 8, 16>}]} {
    %c0_i32 = arith.constant 0 : i32
    %0 = arith.cmpi eq, %arg0, %c0_i32 : i32
    %1 = arith.extui %0 : i1 to i32
    %c0_i32_0 = arith.constant 0 : i32
    %2 = arith.cmpi ne, %1, %c0_i32_0 : i32
    scf.if %2 {
      %c0_56 = arith.constant 0 : index
      %c0_57 = arith.constant 0 : index
      %143 = vector.load %arg1[%c0_56, %c0_57] : memref<8x32xf32, #tpu.memory_space<vmem>>, vector<8x32xf32>
      %c0_58 = arith.constant 0 : index
      %c0_59 = arith.constant 0 : index
      %144 = vector.load %arg14[%c0_58, %c0_59] : memref<8x32xf32, #tpu.memory_space<vmem>>, vector<8x32xf32>
      tpu.vector_store %arg14[%c0_58, %c0_59], %143 {strides = array<i32>} : memref<8x32xf32, #tpu.memory_space<vmem>>, vector<8x32xf32>,
    } else {
    }
    %c0 = arith.constant 0 : index
    %c0_1 = arith.constant 0 : index
    %3 = vector.load %arg14[%c0, %c0_1] : memref<8x32xf32, #tpu.memory_space<vmem>>, vector<8x32xf32>
    %c0_2 = arith.constant 0 : index
    %c0_3 = arith.constant 0 : index
    %4 = vector.load %arg2[%c0_2, %c0_3] : memref<8x32xf32, #tpu.memory_space<vmem>>, vector<8x32xf32>
    %c0_4 = arith.constant 0 : index
    %c0_5 = arith.constant 0 : index
    %5 = vector.load %arg3[%c0_4, %c0_5] : memref<8x32xf32, #tpu.memory_space<vmem>>, vector<8x32xf32>
    %c0_6 = arith.constant 0 : index
    %c0_7 = arith.constant 0 : index
    %6 = vector.load %arg4[%c0_6, %c0_7] : memref<8x8xf32, #tpu.memory_space<vmem>>, vector<8x8xf32>
    %c0_8 = arith.constant 0 : index
    %c0_9 = arith.constant 0 : index
    %c0_10 = arith.constant 0 : index
    %7 = vector.load %arg5[%c0_8, %c0_9, %c0_10] : memref<1x1x32xf32, #tpu.memory_space<vmem>>, vector<1x1x32xf32>
    %8 = vector.shape_cast %7 : vector<1x1x32xf32> to vector<1x32xf32>
    %9 = arith.mulf %3, %3 : vector<8x32xf32>
    %cst = arith.constant dense<0.000000e+00> : vector<8xf32>
    %10 = vector.multi_reduction <add>, %9, %cst [1] : vector<8x32xf32> to vector<8xf32>
    %11 = vector.shape_cast %10 : vector<8xf32> to vector<8x1xf32>
    %cst_11 = arith.constant 3.200000e+01 : f32
    %12 = vector.broadcast %cst_11 : f32 to vector<8x1xf32>
    %13 = arith.divf %11, %12 : vector<8x1xf32>
    %cst_12 = arith.constant 9.99999974E-6 : f32
    %14 = vector.broadcast %cst_12 : f32 to vector<8x1xf32>
    %15 = arith.addf %13, %14 : vector<8x1xf32>
    %16 = math.rsqrt %15 : vector<8x1xf32>
    %17 = vector.broadcast %16 : vector<8x1xf32> to vector<8x32xf32>
    %18 = arith.mulf %3, %17 : vector<8x32xf32>
    %19 = vector.broadcast %8 : vector<1x32xf32> to vector<8x32xf32>
    %20 = arith.mulf %18, %19 : vector<8x32xf32>
    %21 = arith.truncf %20 : vector<8x32xf32> to vector<8x32xbf16>
    %c0_13 = arith.constant 0 : index
    %c0_14 = arith.constant 0 : index
    %c0_15 = arith.constant 0 : index
    %22 = vector.load %arg7[%c0_13, %c0_14, %c0_15] : memref<1x32x112xbf16, #tpu.memory_space<vmem>>, vector<1x32x112xbf16>
    %23 = vector.shape_cast %22 : vector<1x32x112xbf16> to vector<32x112xbf16>
    %cst_16 = arith.constant dense<0.000000e+00> : vector<8x112xf32>
    %24 = tpu.matmul %21, %23, %cst_16 {dimension_numbers = #tpu.dot_dimension_numbers<[1], [0], [0], [1], [0, 0, 1, 1], [], []>} : vector<8x32xbf16>, vector<32x112xbf16>, vector<8x112xf32> -> vector<8x112xf32>
    %25 = vector.extract_strided_slice %24 {offsets = [0, 0], sizes = [8, 32], strides = [1, 1]} : vector<8x112xf32> to vector<8x32xf32>
    %26 = vector.extract_strided_slice %24 {offsets = [0, 32], sizes = [8, 32], strides = [1, 1]} : vector<8x112xf32> to vector<8x32xf32>
    %27 = vector.extract_strided_slice %24 {offsets = [0, 64], sizes = [8, 16], strides = [1, 1]} : vector<8x112xf32> to vector<8x16xf32>
    %28 = vector.extract_strided_slice %24 {offsets = [0, 80], sizes = [8, 16], strides = [1, 1]} : vector<8x112xf32> to vector<8x16xf32>
    %29 = vector.extract_strided_slice %24 {offsets = [0, 96], sizes = [8, 16], strides = [1, 1]} : vector<8x112xf32> to vector<8x16xf32>
    %30 = arith.mulf %25, %4 : vector<8x32xf32>
    %31 = arith.mulf %26, %5 : vector<8x32xf32>
    %32 = arith.addf %30, %31 : vector<8x32xf32>
    %33 = vector.extract_strided_slice %4 {offsets = [0, 0], sizes = [8, 16], strides = [1, 1]} : vector<8x32xf32> to vector<8x16xf32>
    %34 = arith.mulf %27, %33 : vector<8x16xf32>
    %35 = vector.extract_strided_slice %5 {offsets = [0, 0], sizes = [8, 16], strides = [1, 1]} : vector<8x32xf32> to vector<8x16xf32>
    %36 = arith.mulf %28, %35 : vector<8x16xf32>
    %37 = arith.addf %34, %36 : vector<8x16xf32>
    %c0_17 = arith.constant 0 : index
    %c0_18 = arith.constant 0 : index
    %c0_19 = arith.constant 0 : index
    %38 = vector.load %arg12[%c0_17, %c0_18, %c0_19] : memref<1x8x16xf32, #tpu.memory_space<vmem>>, vector<1x8x16xf32>
    %39 = vector.shape_cast %38 : vector<1x8x16xf32> to vector<8x16xf32>
    %40 = vector.shape_cast %37 : vector<8x16xf32> to vector<1x8x16xf32>
    tpu.vector_store %arg12[%c0_17, %c0_18, %c0_19], %40 {strides = array<i32>} : memref<1x8x16xf32, #tpu.memory_space<vmem>>, vector<1x8x16xf32>,
    %c0_20 = arith.constant 0 : index
    %c0_21 = arith.constant 0 : index
    %c0_22 = arith.constant 0 : index
    %41 = vector.load %arg13[%c0_20, %c0_21, %c0_22] : memref<1x8x16xf32, #tpu.memory_space<vmem>>, vector<1x8x16xf32>
    %42 = vector.shape_cast %41 : vector<1x8x16xf32> to vector<8x16xf32>
    %43 = vector.shape_cast %29 : vector<8x16xf32> to vector<1x8x16xf32>
    tpu.vector_store %arg13[%c0_20, %c0_21, %c0_22], %43 {strides = array<i32>} : memref<1x8x16xf32, #tpu.memory_space<vmem>>, vector<1x8x16xf32>,
    %44 = vector.extract_strided_slice %32 {offsets = [0, 0], sizes = [8, 8], strides = [1, 1]} : vector<8x32xf32> to vector<8x8xf32>
    %45 = vector.extract_strided_slice %32 {offsets = [0, 8], sizes = [8, 8], strides = [1, 1]} : vector<8x32xf32> to vector<8x8xf32>
    %46 = vector.extract_strided_slice %32 {offsets = [0, 16], sizes = [8, 8], strides = [1, 1]} : vector<8x32xf32> to vector<8x8xf32>
    %47 = vector.extract_strided_slice %32 {offsets = [0, 24], sizes = [8, 8], strides = [1, 1]} : vector<8x32xf32> to vector<8x8xf32>
    %48 = vector.shape_cast %44 : vector<8x8xf32> to vector<1x8x8xf32>
    %49 = vector.shape_cast %45 : vector<8x8xf32> to vector<1x8x8xf32>
    %50 = vector.shape_cast %46 : vector<8x8xf32> to vector<1x8x8xf32>
    %51 = vector.shape_cast %47 : vector<8x8xf32> to vector<1x8x8xf32>
    %52 = tpu.concatenate %48, %49, %50, %51 in 0 : vector<1x8x8xf32>, vector<1x8x8xf32>, vector<1x8x8xf32>, vector<1x8x8xf32> -> vector<4x8x8xf32>
    %53 = arith.truncf %52 : vector<4x8x8xf32> to vector<4x8x8xbf16>
    %54 = vector.extract_strided_slice %37 {offsets = [0, 0], sizes = [8, 8], strides = [1, 1]} : vector<8x16xf32> to vector<8x8xf32>
    %55 = vector.extract_strided_slice %37 {offsets = [0, 0], sizes = [8, 8], strides = [1, 1]} : vector<8x16xf32> to vector<8x8xf32>
    %56 = vector.extract_strided_slice %37 {offsets = [0, 8], sizes = [8, 8], strides = [1, 1]} : vector<8x16xf32> to vector<8x8xf32>
    %57 = vector.extract_strided_slice %37 {offsets = [0, 8], sizes = [8, 8], strides = [1, 1]} : vector<8x16xf32> to vector<8x8xf32>
    %58 = vector.shape_cast %54 : vector<8x8xf32> to vector<1x8x8xf32>
    %59 = vector.shape_cast %55 : vector<8x8xf32> to vector<1x8x8xf32>
    %60 = vector.shape_cast %56 : vector<8x8xf32> to vector<1x8x8xf32>
    %61 = vector.shape_cast %57 : vector<8x8xf32> to vector<1x8x8xf32>
    %62 = tpu.concatenate %58, %59, %60, %61 in 0 : vector<1x8x8xf32>, vector<1x8x8xf32>, vector<1x8x8xf32>, vector<1x8x8xf32> -> vector<4x8x8xf32>
    %63 = arith.truncf %62 : vector<4x8x8xf32> to vector<4x8x8xbf16>
    %64 = vector.extract_strided_slice %29 {offsets = [0, 0], sizes = [8, 8], strides = [1, 1]} : vector<8x16xf32> to vector<8x8xf32>
    %65 = vector.extract_strided_slice %29 {offsets = [0, 0], sizes = [8, 8], strides = [1, 1]} : vector<8x16xf32> to vector<8x8xf32>
    %66 = vector.extract_strided_slice %29 {offsets = [0, 8], sizes = [8, 8], strides = [1, 1]} : vector<8x16xf32> to vector<8x8xf32>
    %67 = vector.extract_strided_slice %29 {offsets = [0, 8], sizes = [8, 8], strides = [1, 1]} : vector<8x16xf32> to vector<8x8xf32>
    %68 = vector.shape_cast %64 : vector<8x8xf32> to vector<1x8x8xf32>
    %69 = vector.shape_cast %65 : vector<8x8xf32> to vector<1x8x8xf32>
    %70 = vector.shape_cast %66 : vector<8x8xf32> to vector<1x8x8xf32>
    %71 = vector.shape_cast %67 : vector<8x8xf32> to vector<1x8x8xf32>
    %72 = tpu.concatenate %68, %69, %70, %71 in 0 : vector<1x8x8xf32>, vector<1x8x8xf32>, vector<1x8x8xf32>, vector<1x8x8xf32> -> vector<4x8x8xf32>
    %73 = arith.truncf %72 : vector<4x8x8xf32> to vector<4x8x8xbf16>
    %cst_23 = arith.constant dense<0.000000e+00> : vector<4x8x8xf32>
    %74 = tpu.matmul %53, %63, %cst_23 {dimension_numbers = #tpu.dot_dimension_numbers<[2], [2], [1], [1], [0, 0, 0, 1, 1, 1], [0], [0]>} : vector<4x8x8xbf16>, vector<4x8x8xbf16>, vector<4x8x8xf32> -> vector<4x8x8xf32>
    %75 = vector.shape_cast %6 : vector<8x8xf32> to vector<1x8x8xf32>
    %76 = vector.broadcast %75 : vector<1x8x8xf32> to vector<4x8x8xf32>
    %77 = arith.addf %74, %76 : vector<4x8x8xf32>
    %cst_24 = arith.constant dense<0xFF800000> : vector<4x8xf32>
    %78 = vector.multi_reduction <maximumf>, %77, %cst_24 [2] : vector<4x8x8xf32> to vector<4x8xf32>
    %79 = vector.shape_cast %78 : vector<4x8xf32> to vector<4x8x1xf32>
    %80 = vector.broadcast %79 : vector<4x8x1xf32> to vector<4x8x8xf32>
    %81 = arith.subf %77, %80 : vector<4x8x8xf32>
    %82 = math.exp %81 : vector<4x8x8xf32>
    %cst_25 = arith.constant dense<0.000000e+00> : vector<4x8xf32>
    %83 = vector.multi_reduction <add>, %82, %cst_25 [2] : vector<4x8x8xf32> to vector<4x8xf32>
    %84 = vector.shape_cast %83 : vector<4x8xf32> to vector<4x8x1xf32>
    %85 = vector.broadcast %84 : vector<4x8x1xf32> to vector<4x8x8xf32>
    %86 = arith.divf %82, %85 : vector<4x8x8xf32>
    %87 = arith.truncf %86 : vector<4x8x8xf32> to vector<4x8x8xbf16>
    %cst_26 = arith.constant dense<0.000000e+00> : vector<4x8x8xf32>
    %88 = tpu.matmul %87, %73, %cst_26 {dimension_numbers = #tpu.dot_dimension_numbers<[2], [1], [1], [2], [0, 0, 0, 1, 1, 2], [0], [0]>} : vector<4x8x8xbf16>, vector<4x8x8xbf16>, vector<4x8x8xf32> -> vector<4x8x8xf32>
    %89 = vector.extract_strided_slice %88 {offsets = [0, 0, 0], sizes = [1, 8, 8], strides = [1, 1, 1]} : vector<4x8x8xf32> to vector<1x8x8xf32>
    %90 = vector.shape_cast %89 : vector<1x8x8xf32> to vector<8x8xf32>
    %c0_27 = arith.constant 0 : index
    %c0_28 = arith.constant 0 : index
    %91 = vector.load %arg15[%c0_27, %c0_28] : memref<8x32xf32, #tpu.memory_space<vmem>>, vector<8x8xf32>
    tpu.vector_store %arg15[%c0_27, %c0_28], %90 {strides = array<i32>} : memref<8x32xf32, #tpu.memory_space<vmem>>, vector<8x8xf32>,
    %92 = vector.extract_strided_slice %88 {offsets = [1, 0, 0], sizes = [1, 8, 8], strides = [1, 1, 1]} : vector<4x8x8xf32> to vector<1x8x8xf32>
    %93 = vector.shape_cast %92 : vector<1x8x8xf32> to vector<8x8xf32>
    %c0_29 = arith.constant 0 : index
    %c8 = arith.constant 8 : index
    %94 = vector.load %arg15[%c0_29, %c8] : memref<8x32xf32, #tpu.memory_space<vmem>>, vector<8x8xf32>
    tpu.vector_store %arg15[%c0_29, %c8], %93 {strides = array<i32>} : memref<8x32xf32, #tpu.memory_space<vmem>>, vector<8x8xf32>,
    %95 = vector.extract_strided_slice %88 {offsets = [2, 0, 0], sizes = [1, 8, 8], strides = [1, 1, 1]} : vector<4x8x8xf32> to vector<1x8x8xf32>
    %96 = vector.shape_cast %95 : vector<1x8x8xf32> to vector<8x8xf32>
    %c0_30 = arith.constant 0 : index
    %c16 = arith.constant 16 : index
    %97 = vector.load %arg15[%c0_30, %c16] : memref<8x32xf32, #tpu.memory_space<vmem>>, vector<8x8xf32>
    tpu.vector_store %arg15[%c0_30, %c16], %96 {strides = array<i32>} : memref<8x32xf32, #tpu.memory_space<vmem>>, vector<8x8xf32>,
    %98 = vector.extract_strided_slice %88 {offsets = [3, 0, 0], sizes = [1, 8, 8], strides = [1, 1, 1]} : vector<4x8x8xf32> to vector<1x8x8xf32>
    %99 = vector.shape_cast %98 : vector<1x8x8xf32> to vector<8x8xf32>
    %c0_31 = arith.constant 0 : index
    %c24 = arith.constant 24 : index
    %100 = vector.load %arg15[%c0_31, %c24] : memref<8x32xf32, #tpu.memory_space<vmem>>, vector<8x8xf32>
    tpu.vector_store %arg15[%c0_31, %c24], %99 {strides = array<i32>} : memref<8x32xf32, #tpu.memory_space<vmem>>, vector<8x8xf32>,
    %c0_32 = arith.constant 0 : index
    %c0_33 = arith.constant 0 : index
    %101 = vector.load %arg15[%c0_32, %c0_33] : memref<8x32xf32, #tpu.memory_space<vmem>>, vector<8x32xf32>
    %102 = arith.truncf %101 : vector<8x32xf32> to vector<8x32xbf16>
    %c0_34 = arith.constant 0 : index
    %c0_35 = arith.constant 0 : index
    %c0_36 = arith.constant 0 : index
    %103 = vector.load %arg8[%c0_34, %c0_35, %c0_36] : memref<1x32x32xbf16, #tpu.memory_space<vmem>>, vector<1x32x32xbf16>
    %104 = vector.shape_cast %103 : vector<1x32x32xbf16> to vector<32x32xbf16>
    %cst_37 = arith.constant dense<0.000000e+00> : vector<8x32xf32>
    %105 = tpu.matmul %102, %104, %cst_37 {dimension_numbers = #tpu.dot_dimension_numbers<[1], [0], [0], [1], [0, 0, 1, 1], [], []>} : vector<8x32xbf16>, vector<32x32xbf16>, vector<8x32xf32> -> vector<8x32xf32>
    %106 = arith.addf %3, %105 : vector<8x32xf32>
    %c0_38 = arith.constant 0 : index
    %c0_39 = arith.constant 0 : index
    %c0_40 = arith.constant 0 : index
    %107 = vector.load %arg6[%c0_38, %c0_39, %c0_40] : memref<1x1x32xf32, #tpu.memory_space<vmem>>, vector<1x1x32xf32>
    %108 = vector.shape_cast %107 : vector<1x1x32xf32> to vector<1x32xf32>
    %109 = arith.mulf %106, %106 : vector<8x32xf32>
    %cst_41 = arith.constant dense<0.000000e+00> : vector<8xf32>
    %110 = vector.multi_reduction <add>, %109, %cst_41 [1] : vector<8x32xf32> to vector<8xf32>
    %111 = vector.shape_cast %110 : vector<8xf32> to vector<8x1xf32>
    %cst_42 = arith.constant 3.200000e+01 : f32
    %112 = vector.broadcast %cst_42 : f32 to vector<8x1xf32>
    %113 = arith.divf %111, %112 : vector<8x1xf32>
    %cst_43 = arith.constant 9.99999974E-6 : f32
    %114 = vector.broadcast %cst_43 : f32 to vector<8x1xf32>
    %115 = arith.addf %113, %114 : vector<8x1xf32>
    %116 = math.rsqrt %115 : vector<8x1xf32>
    %117 = vector.broadcast %116 : vector<8x1xf32> to vector<8x32xf32>
    %118 = arith.mulf %106, %117 : vector<8x32xf32>
    %119 = vector.broadcast %108 : vector<1x32xf32> to vector<8x32xf32>
    %120 = arith.mulf %118, %119 : vector<8x32xf32>
    %121 = arith.truncf %120 : vector<8x32xf32> to vector<8x32xbf16>
    %c0_44 = arith.constant 0 : index
    %c0_45 = arith.constant 0 : index
    %c0_46 = arith.constant 0 : index
    %122 = vector.load %arg9[%c0_44, %c0_45, %c0_46] : memref<1x32x128xbf16, #tpu.memory_space<vmem>>, vector<1x32x128xbf16>
    %123 = vector.shape_cast %122 : vector<1x32x128xbf16> to vector<32x128xbf16>
    %cst_47 = arith.constant dense<0.000000e+00> : vector<8x128xf32>
    %124 = tpu.matmul %121, %123, %cst_47 {dimension_numbers = #tpu.dot_dimension_numbers<[1], [0], [0], [1], [0, 0, 1, 1], [], []>} : vector<8x32xbf16>, vector<32x128xbf16>, vector<8x128xf32> -> vector<8x128xf32>
    %125 = vector.extract_strided_slice %124 {offsets = [0, 0], sizes = [8, 64], strides = [1, 1]} : vector<8x128xf32> to vector<8x64xf32>
    %126 = vector.extract_strided_slice %124 {offsets = [0, 64], sizes = [8, 64], strides = [1, 1]} : vector<8x128xf32> to vector<8x64xf32>
    %127 = arith.negf %125 : vector<8x64xf32>
    %128 = math.exp %127 : vector<8x64xf32>
    %cst_48 = arith.constant 1.000000e+00 : f32
    %129 = vector.broadcast %cst_48 : f32 to vector<8x64xf32>
    %130 = arith.addf %129, %128 : vector<8x64xf32>
    %131 = arith.divf %129, %130 : vector<8x64xf32>
    %132 = arith.mulf %125, %131 : vector<8x64xf32>
    %133 = arith.mulf %132, %126 : vector<8x64xf32>
    %134 = arith.truncf %133 : vector<8x64xf32> to vector<8x64xbf16>
    %c0_49 = arith.constant 0 : index
    %c0_50 = arith.constant 0 : index
    %c0_51 = arith.constant 0 : index
    %135 = vector.load %arg10[%c0_49, %c0_50, %c0_51] : memref<1x64x32xbf16, #tpu.memory_space<vmem>>, vector<1x64x32xbf16>
    %136 = vector.shape_cast %135 : vector<1x64x32xbf16> to vector<64x32xbf16>
    %cst_52 = arith.constant dense<0.000000e+00> : vector<8x32xf32>
    %137 = tpu.matmul %134, %136, %cst_52 {dimension_numbers = #tpu.dot_dimension_numbers<[1], [0], [0], [1], [0, 0, 1, 1], [], []>} : vector<8x64xbf16>, vector<64x32xbf16>, vector<8x32xf32> -> vector<8x32xf32>
    %138 = arith.addf %106, %137 : vector<8x32xf32>
    %c0_53 = arith.constant 0 : index
    %c0_54 = arith.constant 0 : index
    %139 = vector.load %arg14[%c0_53, %c0_54] : memref<8x32xf32, #tpu.memory_space<vmem>>, vector<8x32xf32>
    tpu.vector_store %arg14[%c0_53, %c0_54], %138 {strides = array<i32>} : memref<8x32xf32, #tpu.memory_space<vmem>>, vector<8x32xf32>,
    %c1_i32 = arith.constant 1 : i32
    %140 = arith.cmpi eq, %arg0, %c1_i32 : i32
    %141 = arith.extui %140 : i1 to i32
    %c0_i32_55 = arith.constant 0 : i32
    %142 = arith.cmpi ne, %141, %c0_i32_55 : i32
    scf.if %142 {
      %c0_56 = arith.constant 0 : index
      %c0_57 = arith.constant 0 : index
      %143 = vector.load %arg11[%c0_56, %c0_57] : memref<8x32xf32, #tpu.memory_space<vmem>>, vector<8x32xf32>
      tpu.vector_store %arg11[%c0_56, %c0_57], %138 {strides = array<i32>} : memref<8x32xf32, #tpu.memory_space<vmem>>, vector<8x32xf32>,
    } else {
    }
    return
  }
  func.func @transform_0(%arg0: i32) -> (i32, i32) {
    %c0_i32 = arith.constant 0 : i32
    %c0_i32_0 = arith.constant 0 : i32
    %c0_i32_1 = arith.constant 0 : i32
    return %c0_i32, %c0_i32_0 : i32, i32
  }
  func.func @transform_1(%arg0: i32) -> (i32, i32) {
    %c0_i32 = arith.constant 0 : i32
    %c0_i32_0 = arith.constant 0 : i32
    %c0_i32_1 = arith.constant 0 : i32
    return %c0_i32, %c0_i32_0 : i32, i32
  }
  func.func @transform_2(%arg0: i32) -> (i32, i32) {
    %c0_i32 = arith.constant 0 : i32
    %c0_i32_0 = arith.constant 0 : i32
    %c0_i32_1 = arith.constant 0 : i32
    return %c0_i32, %c0_i32_0 : i32, i32
  }
  func.func @transform_3(%arg0: i32) -> (i32, i32) {
    %c0_i32 = arith.constant 0 : i32
    %c0_i32_0 = arith.constant 0 : i32
    %c0_i32_1 = arith.constant 0 : i32
    return %c0_i32, %c0_i32_0 : i32, i32
  }
  func.func @transform_4(%arg0: i32) -> (i32, i32, i32) {
    %c0_i32 = arith.constant 0 : i32
    %c0_i32_0 = arith.constant 0 : i32
    %c0_i32_1 = arith.constant 0 : i32
    return %arg0, %c0_i32, %c0_i32_0 : i32, i32, i32
  }
  func.func @transform_5(%arg0: i32) -> (i32, i32, i32) {
    %c0_i32 = arith.constant 0 : i32
    %c0_i32_0 = arith.constant 0 : i32
    %c0_i32_1 = arith.constant 0 : i32
    return %arg0, %c0_i32, %c0_i32_0 : i32, i32, i32
  }
  func.func @transform_6(%arg0: i32) -> (i32, i32, i32) {
    %c0_i32 = arith.constant 0 : i32
    %c0_i32_0 = arith.constant 0 : i32
    %c0_i32_1 = arith.constant 0 : i32
    return %arg0, %c0_i32, %c0_i32_0 : i32, i32, i32
  }
  func.func @transform_7(%arg0: i32) -> (i32, i32, i32) {
    %c0_i32 = arith.constant 0 : i32
    %c0_i32_0 = arith.constant 0 : i32
    %c0_i32_1 = arith.constant 0 : i32
    return %arg0, %c0_i32, %c0_i32_0 : i32, i32, i32
  }
  func.func @transform_8(%arg0: i32) -> (i32, i32, i32) {
    %c0_i32 = arith.constant 0 : i32
    %c0_i32_0 = arith.constant 0 : i32
    %c0_i32_1 = arith.constant 0 : i32
    return %arg0, %c0_i32, %c0_i32_0 : i32, i32, i32
  }
  func.func @transform_9(%arg0: i32) -> (i32, i32, i32) {
    %c0_i32 = arith.constant 0 : i32
    %c0_i32_0 = arith.constant 0 : i32
    %c0_i32_1 = arith.constant 0 : i32
    return %arg0, %c0_i32, %c0_i32_0 : i32, i32, i32
  }
  func.func @transform_10(%arg0: i32) -> (i32, i32) {
    %c0_i32 = arith.constant 0 : i32
    %c0_i32_0 = arith.constant 0 : i32
    %c0_i32_1 = arith.constant 0 : i32
    return %c0_i32, %c0_i32_0 : i32, i32
  }
  func.func @transform_11(%arg0: i32) -> (i32, i32, i32) {
    %c0_i32 = arith.constant 0 : i32
    %c0_i32_0 = arith.constant 0 : i32
    %c0_i32_1 = arith.constant 0 : i32
    return %arg0, %c0_i32, %c0_i32_0 : i32, i32, i32
  }
  func.func @transform_12(%arg0: i32) -> (i32, i32, i32) {
    %c0_i32 = arith.constant 0 : i32
    %c0_i32_0 = arith.constant 0 : i32
    %c0_i32_1 = arith.constant 0 : i32
    return %arg0, %c0_i32, %c0_i32_0 : i32, i32, i32
  }
}

</mosaic_0001>

<llo_original>
// kernel: tile.19
$region0: #{tile.19}
  %s0 = inlined_call_operand.vmem [shape: f32[8,4,8], index: 0, kind: input, shape index: {}]
  %s1 = inlined_call_operand.vmem [shape: f32[8,32], index: 1, kind: output, shape index: {}]
  $region1: #{tile.19} parent=0
    #allocation0 [shape = 'u8[32768]{0}', space=vmem, size = 0x8000, scoped, tag = 'scoped mem for input reshape']
    %s3 = ssub.s32 16, 1
    %s4 = scalar_lea.vmem %s0, 28
    %v5 = vld [vmem:[%s4] sm:%s3]
    %s6 = scalar_lea.vmem [#allocation0], 56
    %7 = vst [vmem:[%s6] sm:%s3] %v5
    %s8 = scalar_lea.vmem %s0, 24
    %v9 = vld [vmem:[%s8] sm:%s3]
    %s10 = scalar_lea.vmem [#allocation0], 48
    %11 = vst [vmem:[%s10] sm:%s3] %v9
    %s12 = scalar_lea.vmem %s0, 20
    %v13 = vld [vmem:[%s12] sm:%s3]
    %s14 = scalar_lea.vmem [#allocation0], 40
    %15 = vst [vmem:[%s14] sm:%s3] %v13
    %s16 = scalar_lea.vmem %s0, 16
    %v17 = vld [vmem:[%s16] sm:%s3]
    %s18 = scalar_lea.vmem [#allocation0], 32
    %19 = vst [vmem:[%s18] sm:%s3] %v17
    %s20 = scalar_lea.vmem %s0, 12
    %v21 = vld [vmem:[%s20] sm:%s3]
    %s22 = scalar_lea.vmem [#allocation0], 24
    %23 = vst [vmem:[%s22] sm:%s3] %v21
    %s24 = scalar_lea.vmem %s0, 8
    %v25 = vld [vmem:[%s24] sm:%s3]
    %s26 = scalar_lea.vmem [#allocation0], 16
    %27 = vst [vmem:[%s26] sm:%s3] %v25
    %s28 = scalar_lea.vmem %s0, 4
    %v29 = vld [vmem:[%s28] sm:%s3]
    %s30 = scalar_lea.vmem [#allocation0], 8
    %31 = vst [vmem:[%s30] sm:%s3] %v29
    %v32 = vld [vmem:[%s0] sm:%s3]
    %33 = vst [vmem:[#allocation0] sm:%s3] %v32
    %v34 = vld [vmem:[#allocation0] ss:$8 sm:$0xf]
    %v35 = vld [vmem:[#allocation0] ss:$8 sm:$0xf0]
    %vm36 = vcmask 1047556
    %v37 = vsel %vm36, %v35, %v34
    %vm38 = vcmask 64512
    %39 = vst.msk [vmem:[%s1] sm:$0xff] %vm38, %v37
    %s40 = scalar_lea.vmem [#allocation0], 3
    %v41 = vld [vmem:[%s40] ss:$8 sm:$0xf]
    %s42 = scalar_lea.vmem [#allocation0], 3
    %v43 = vld [vmem:[%s42] ss:$8 sm:$0xf0]
    %vm44 = vcmask 1047556
    %v45 = vsel %vm44, %v43, %v41
    %46 = vrot.lane.b32.xlu0 %v45, 24
    %v47 = vpop.permute.xlu0 %46
    %vm48 = vcmask 261312
    %49 = vst.msk [vmem:[%s1] sm:$0xff] %vm48, %v47
    %s50 = scalar_lea.vmem [#allocation0], 2
    %v51 = vld [vmem:[%s50] ss:$8 sm:$0xf]
    %s52 = scalar_lea.vmem [#allocation0], 2
    %v53 = vld [vmem:[%s52] ss:$8 sm:$0xf0]
    %vm54 = vcmask 1047556
    %v55 = vsel %vm54, %v53, %v51
    %56 = vrot.lane.b32.xlu0 %v55, 16
    %v57 = vpop.permute.xlu0 %56
    %vm58 = vcmask 195712
    %59 = vst.msk [vmem:[%s1] sm:$0xff] %vm58, %v57
    %s60 = scalar_lea.vmem [#allocation0], 1
    %v61 = vld [vmem:[%s60] ss:$8 sm:$0xf]
    %s62 = scalar_lea.vmem [#allocation0], 1
    %v63 = vld [vmem:[%s62] ss:$8 sm:$0xf0]
    %vm64 = vcmask 1047556
    %v65 = vsel %vm64, %v63, %v61
    %66 = vrot.lane.b32.xlu0 %v65, 8
    %v67 = vpop.permute.xlu0 %66
    %vm68 = vcmask 130112
    %69 = vst.msk [vmem:[%s1] sm:$0xff] %vm68, %v67

// kernel: sim_model_forward.3
$region0: #{sim_model_forward.3}
  #allocation0 [shape = 'u32[]', space=smem, size = 0x4, offset = 0x4, fixed_abs, tag = 'smem constant byte address 0x4 - core index']
  #allocation1 [shape = 'u32[72,128]{1,0:T(1,128)}', space=vmem, size = 0x9000, scoped, tag = 'internal scratch']
  %s0 = inlined_call_operand.vmem [shape: f32[8,32], index: 0, kind: input, shape index: {}]
  %s1 = inlined_call_operand.vmem [shape: f32[1,32], index: 1, kind: input, shape index: {}]
  %s2 = inlined_call_operand.vmem [shape: bf16[32,64], index: 2, kind: input, shape index: {}]
  %s3 = inlined_call_operand.hbm [shape: f32[8,64], index: 3, kind: output, shape index: {}]
  %s4 = sld [smem:[#allocation0]]
  $region22: #{sim_model_forward.3} parent=0
    _
  %s6 = ssub.s32 1, %s4
  %s7 = scalar_select 0, %s6, %s4
  $region1: #{sim_model_forward.3} parent=0
    #allocation2 [shape = 'u8[4096]{0}', space=vmem, size = 0x1000, scoped, tag = 'output window, operand 0, single buffered']
    #allocation3 [shape = 's32[1]{0}', space=sflag, size = 0x4, scoped, tag = 'scoped memory for sim_model_forward.3']
    %8 = vsyncpa [#allocation3], 0
    // Predicated region
    $region2: #{sim_model_forward.3} parent=1 // pred_check
      _
    $region3: #{sim_model_forward.3} parent=1 // pred_check_branch
      %10 = sbr.rel (0) target = $region5
    $region4: #{sim_model_forward.3} parent=1 // pred_region
      _
    $region5: #{sim_model_forward.3} parent=1 // pred_fallthru
      _
    // Predicated region
    $region6: #{sim_model_forward.3} parent=1 // pred_check
      _
    $region7: #{sim_model_forward.3} parent=1 // pred_check_branch
      %12 = sbr.rel (0) target = $region9
    $region8: #{sim_model_forward.3} parent=1 // pred_region
      _
    $region9: #{sim_model_forward.3} parent=1 // pred_fallthru
      _
    // Predicated region
    $region10: #{sim_model_forward.3} parent=1 // pred_check
      _
    $region11: #{sim_model_forward.3} parent=1 // pred_check_branch
      %14 = sbr.rel (0) target = $region13
    $region12: #{sim_model_forward.3} parent=1 // pred_region
      _
    $region13: #{sim_model_forward.3} parent=1 // pred_fallthru
      _
    %v16 = vld [vmem:[%s0] sm:$0xff]
    %v17 = vmul.f32 %v16, %v16
    %vm18 = vcmask 261120
    %v19 = vsel %vm18, %v17, 0.0
    %20 = vadd.xlane.f32.xlu0 %v19
    %v21 = vpop.xlane.xlu0 %20
    %v22 = vrcp.pop 32.0
    %v23 = vmul.f32 32.0, %v22
    %v24 = vsub.f32 1.0, %v23
    %v25 = vmul.f32 %v22, %v24
    %v26 = vadd.f32 %v22, %v25
    %vm27 = vweird.f32 %v22
    %v28 = vsel %vm27, %v22, %v26
    %v29 = vmul.f32 %v21, %v28
    %v30 = vadd.f32 %v29, 1e-05
    %v31 = vrsqrt.pop %v30
    %v32 = vmul.f32 %v31, %v30
    %v33 = vmul.f32 %v32, %v31
    %v34 = vmul.f32 0.5, %v33
    %v35 = vsub.f32 1.5, %v34
    %v36 = vmul.f32 %v31, %v35
    %vm37 = vweird.f32 %v30
    %vm38 = vweird.f32 %v31
    %vm39 = vmor %vm37, %vm38
    %v40 = vsel %vm39, %v31, %v36
    %v41 = vmul.f32 %v16, %v40
    %v42 = vld [vmem:[%s1] sm:$0x1]
    %v44 = vperm.slane %v42, 0
    %v46 = vmul.f32 %v41, %v44
    %v47 = vpack.c.bf16 %v46, %v46
    %v48 = vld [vmem:[%s2] sm:$0xf]
    %v49 = vld [vmem:[%s2 + $0x4] sm:$0xf]
    %v50 = vld [vmem:[%s2 + $0x8] sm:$0xf]
    %v51 = vld [vmem:[%s2 + $0xc] sm:$0xf]
    %v56 = vunpack.c.l.b16 %v48
    %v57 = vunpack.c.l.b16 %v49
    %v58 = vunpack.c.l.b16 %v50
    %v59 = vunpack.c.l.b16 %v51
    %v60 = vpack.c.b16 %v57, %v56
    %v61 = vpack.c.b16 %v59, %v58
    %v65 = vsel %vm18, %v47, 0
    %67 = vmatpush.bf16.msra.mxu0 0
    %68 = vmatpush.bf16.msra.mxu0 0
    %69 = vmatpush.bf16.msra.mxu0 0
    %70 = vmatpush.bf16.msra.mxu0 0
    %71 = vmatpush.bf16.msra.mxu0 0
    %72 = vmatpush.bf16.msra.mxu0 0
    %73 = vmatpush.bf16.msra.mxu0 %v61
    %74 = vmatpush.bf16.msra.mxu0 %v60
    %75 = vmatmul.bf16.gmra.mxu0 %v65
    %v76 = vpop.f32.mrf.mxu0
    %v77 = vadd.f32 0.0, %v76
    %v78 = vpop.f32.mrf.mxu0
    %79 = vdwg.mxu0
    %vm80 = vcmask 523264
    %81 = vst.msk [vmem:[#allocation2] sm:$0xff] %vm80, %v77
    // Predicated region
    $region14: #{sim_model_forward.3} parent=1 // pred_check
      _
    $region15: #{sim_model_forward.3} parent=1 // pred_check_branch
      %83 = sbr.rel (0) target = $region17
    $region16: #{sim_model_forward.3} parent=1 // pred_region
      %85 = vsyncadd [#allocation3], 0
      %s87 = sshll.u32 [#allocation2], 4
      %s88 = int_to_ptr.vmem [resolvable:$true] %s87
      %s89 = sshll.u32 %s3, 4
      %s90 = int_to_ptr.hbm [resolvable:$true] %s89
      %92 = dma.vmem_to_hbm [thread:$0]  %s88, 128, %s90, [#allocation3]
    $region17: #{sim_model_forward.3} parent=1 // pred_fallthru
      _
    // Predicated region
    $region18: #{sim_model_forward.3} parent=1 // pred_check
      _
    $region19: #{sim_model_forward.3} parent=1 // pred_check_branch
      %94 = sbr.rel (0) target = $region21
    $region20: #{sim_model_forward.3} parent=1 // pred_region
      %96 = dma.done [#allocation3], 128
    $region21: #{sim_model_forward.3} parent=1 // pred_fallthru
      _
    %97 = vsyncpa [#allocation3], 1

// kernel: sim_model_forward.2
$region0: #{sim_model_forward.2}
  #allocation0 [shape = 'u32[]', space=smem, size = 0x4, offset = 0x4, fixed_abs, tag = 'smem constant byte address 0x4 - core index']
  #allocation1 [shape = 'u32[72,128]{1,0:T(1,128)}', space=vmem, size = 0x9000, scoped, tag = 'internal scratch']
  #allocation2 [shape = 'f32[8,32]{1,0:T(8,128)}', space=vmem, size = 0x1000, scoped, tag = 'scratch operand']
  #allocation3 [shape = 'f32[8,32]{1,0:T(8,128)}', space=vmem, size = 0x1000, scoped, tag = 'scratch operand']
  %s0 = inlined_call_operand.vmem [shape: f32[8,32], index: 0, kind: input, shape index: {}]
  %s1 = inlined_call_operand.vmem [shape: f32[8,32], index: 1, kind: input, shape index: {}]
  %s2 = inlined_call_operand.vmem [shape: f32[8,32], index: 2, kind: input, shape index: {}]
  %s3 = inlined_call_operand.vmem [shape: f32[8,8], index: 3, kind: input, shape index: {}]
  %s4 = inlined_call_operand.vmem [shape: f32[2,1,32], index: 4, kind: input, shape index: {}]
  %s5 = inlined_call_operand.vmem [shape: f32[2,1,32], index: 5, kind: input, shape index: {}]
  %s6 = inlined_call_operand.vmem [shape: bf16[2,32,112], index: 6, kind: input, shape index: {}]
  %s7 = inlined_call_operand.vmem [shape: bf16[2,32,32], index: 7, kind: input, shape index: {}]
  %s8 = inlined_call_operand.vmem [shape: bf16[2,32,128], index: 8, kind: input, shape index: {}]
  %s9 = inlined_call_operand.vmem [shape: bf16[2,64,32], index: 9, kind: input, shape index: {}]
  %s10 = inlined_call_operand.vmem [shape: f32[8,32], index: 10, kind: output, shape index: {0}]
  %s11 = inlined_call_operand.vmem [shape: f32[2,8,16], index: 11, kind: output, shape index: {1}]
  %s12 = inlined_call_operand.vmem [shape: f32[2,8,16], index: 12, kind: output, shape index: {2}]
  %13 = xla_tuple %s10, %s11, %s12
  %s14 = sld [smem:[#allocation0]]
  $region97: #{sim_model_forward.2} parent=0
    _
  %s16 = ssub.s32 1, %s14
  %s17 = scalar_select 0, %s16, %s14
  loop: start=0, step=1, limit=4
  $region2: #{sim_model_forward.2} parent=0 // loop_pre_header
    _
  $region3: #{sim_model_forward.2} parent=0 // loop_header
    %s19 = sphi 0, %s23
    %p20 = scmp.ge.s32.totalorder %s19, 4
    %s27 = sphi 0, %s27
    %s29 = sphi 0, %s27
    %s30 = sphi 0, %s29
    %s44 = sphi 0, %s30
    %s48 = sphi 0, %s48
    %s50 = sphi 0, %s48
    %s51 = sphi 0, %s50
    %s65 = sphi 0, %s51
    %s69 = sphi 0, %s69
    %s71 = sphi 0, %s69
    %s72 = sphi 0, %s71
    %s86 = sphi 0, %s72
    %s90 = sphi 0, %s90
    %s92 = sphi 0, %s90
    %s93 = sphi 0, %s92
    %s107 = sphi 0, %s93
    %s113 = sphi 0, %s115
    %s116 = sphi 0, %s113
    %s117 = sphi 0, %s116
    %s133 = sphi 0, %s117
    %s139 = sphi 0, %s141
    %s142 = sphi 0, %s139
    %s143 = sphi 0, %s142
    %s159 = sphi 0, %s143
    %s165 = sphi 0, %s167
    %s168 = sphi 0, %s165
    %s169 = sphi 0, %s168
    %s185 = sphi 0, %s169
    %s191 = sphi 0, %s193
    %s194 = sphi 0, %s191
    %s195 = sphi 0, %s194
    %s211 = sphi 0, %s195
    %s217 = sphi 0, %s219
    %s220 = sphi 0, %s217
    %s221 = sphi 0, %s220
    %s237 = sphi 0, %s221
    %s243 = sphi 0, %s245
    %s246 = sphi 0, %s243
    %s247 = sphi 0, %s246
    %s263 = sphi 0, %s247
    %s267 = sphi 0, %s267
    %s269 = sphi 0, %s267
    %s270 = sphi 0, %s269
    %s284 = sphi 0, %s270
    %s290 = sphi 0, %s292
    %s293 = sphi 0, %s290
    %s294 = sphi 0, %s293
    %s310 = sphi 0, %s294
    %s316 = sphi 0, %s318
    %s319 = sphi 0, %s316
    %s320 = sphi 0, %s319
    %s336 = sphi 0, %s320
  $region4: #{sim_model_forward.2} parent=0 // loop_header_branch
    %22 = sbr.rel (%p20) target = $region8
  $region5: #{sim_model_forward.2} parent=0 // loop_body
    %s24 = ssub.s32 %s19, 1
    %s25 = ssub.s32 %s19, 2
    %s26 = sadd.s32 %s19, 1
    %s28 = sadd.s32 %s27, 1
    %p31 = scmp.eq.s32.totalorder %s19, 1
    %p32 = scmp.ne.s32.totalorder %s27, %s29
    %p33 = scmp.eq.s32.totalorder %s19, 0
    %p34 = por %p32, %p33
    %p35 = scmp.ne.s32.totalorder %s27, %s29
    %p36 = scmp.eq.s32.totalorder %s24, 1
    %p37 = por %p35, %p36
    %p38 = scmp.ne.s32.totalorder %s29, %s30
    %p39 = scmp.eq.s32.totalorder %s24, 0
    %p40 = por %p38, %p39
    %p41 = scmp.ne.s32.totalorder %s29, %s30
    %p42 = scmp.eq.s32.totalorder %s25, 1
    %p43 = por %p41, %p42
    %p45 = scmp.ne.s32.totalorder %s30, %s44
    %p46 = scmp.eq.s32.totalorder %s25, 0
    %p47 = por %p45, %p46
    %s49 = sadd.s32 %s48, 1
    %p52 = scmp.eq.s32.totalorder %s19, 1
    %p53 = scmp.ne.s32.totalorder %s48, %s50
    %p54 = scmp.eq.s32.totalorder %s19, 0
    %p55 = por %p53, %p54
    %p56 = scmp.ne.s32.totalorder %s48, %s50
    %p57 = scmp.eq.s32.totalorder %s24, 1
    %p58 = por %p56, %p57
    %p59 = scmp.ne.s32.totalorder %s50, %s51
    %p60 = scmp.eq.s32.totalorder %s24, 0
    %p61 = por %p59, %p60
    %p62 = scmp.ne.s32.totalorder %s50, %s51
    %p63 = scmp.eq.s32.totalorder %s25, 1
    %p64 = por %p62, %p63
    %p66 = scmp.ne.s32.totalorder %s51, %s65
    %p67 = scmp.eq.s32.totalorder %s25, 0
    %p68 = por %p66, %p67
    %s70 = sadd.s32 %s69, 1
    %p73 = scmp.eq.s32.totalorder %s19, 1
    %p74 = scmp.ne.s32.totalorder %s69, %s71
    %p75 = scmp.eq.s32.totalorder %s19, 0
    %p76 = por %p74, %p75
    %p77 = scmp.ne.s32.totalorder %s69, %s71
    %p78 = scmp.eq.s32.totalorder %s24, 1
    %p79 = por %p77, %p78
    %p80 = scmp.ne.s32.totalorder %s71, %s72
    %p81 = scmp.eq.s32.totalorder %s24, 0
    %p82 = por %p80, %p81
    %p83 = scmp.ne.s32.totalorder %s71, %s72
    %p84 = scmp.eq.s32.totalorder %s25, 1
    %p85 = por %p83, %p84
    %p87 = scmp.ne.s32.totalorder %s72, %s86
    %p88 = scmp.eq.s32.totalorder %s25, 0
    %p89 = por %p87, %p88
    %s91 = sadd.s32 %s90, 1
    %p94 = scmp.eq.s32.totalorder %s19, 1
    %p95 = scmp.ne.s32.totalorder %s90, %s92
    %p96 = scmp.eq.s32.totalorder %s19, 0
    %p97 = por %p95, %p96
    %p98 = scmp.ne.s32.totalorder %s90, %s92
    %p99 = scmp.eq.s32.totalorder %s24, 1
    %p100 = por %p98, %p99
    %p101 = scmp.ne.s32.totalorder %s92, %s93
    %p102 = scmp.eq.s32.totalorder %s24, 0
    %p103 = por %p101, %p102
    %p104 = scmp.ne.s32.totalorder %s92, %s93
    %p105 = scmp.eq.s32.totalorder %s25, 1
    %p106 = por %p104, %p105
    %p108 = scmp.ne.s32.totalorder %s93, %s107
    %p109 = scmp.eq.s32.totalorder %s25, 0
    %p110 = por %p108, %p109
    %s111 = ssub.s32 %s19, %s26
    %p112 = scmp.eq.s32.totalorder %s111, 0
    %s114 = sadd.s32 %s113, 1
    %s115 = scalar_select %p112, %s113, %s114
    %p118 = pneg %p112
    %p119 = scmp.eq.s32.totalorder %s19, 1
    %p120 = por %p118, %p119
    %p121 = scmp.ne.s32.totalorder %s113, %s116
    %p122 = scmp.eq.s32.totalorder %s19, 0
    %p123 = por %p121, %p122
    %p124 = scmp.ne.s32.totalorder %s113, %s116
    %p125 = scmp.eq.s32.totalorder %s24, 1
    %p126 = por %p124, %p125
    %p127 = scmp.ne.s32.totalorder %s116, %s117
    %p128 = scmp.eq.s32.totalorder %s24, 0
    %p129 = por %p127, %p128
    %p130 = scmp.ne.s32.totalorder %s116, %s117
    %p131 = scmp.eq.s32.totalorder %s25, 1
    %p132 = por %p130, %p131
    %p134 = scmp.ne.s32.totalorder %s117, %s133
    %p135 = scmp.eq.s32.totalorder %s25, 0
    %p136 = por %p134, %p135
    %s137 = ssub.s32 %s19, %s26
    %p138 = scmp.eq.s32.totalorder %s137, 0
    %s140 = sadd.s32 %s139, 1
    %s141 = scalar_select %p138, %s139, %s140
    %p144 = pneg %p138
    %p145 = scmp.eq.s32.totalorder %s19, 1
    %p146 = por %p144, %p145
    %p147 = scmp.ne.s32.totalorder %s139, %s142
    %p148 = scmp.eq.s32.totalorder %s19, 0
    %p149 = por %p147, %p148
    %p150 = scmp.ne.s32.totalorder %s139, %s142
    %p151 = scmp.eq.s32.totalorder %s24, 1
    %p152 = por %p150, %p151
    %p153 = scmp.ne.s32.totalorder %s142, %s143
    %p154 = scmp.eq.s32.totalorder %s24, 0
    %p155 = por %p153, %p154
    %p156 = scmp.ne.s32.totalorder %s142, %s143
    %p157 = scmp.eq.s32.totalorder %s25, 1
    %p158 = por %p156, %p157
    %p160 = scmp.ne.s32.totalorder %s143, %s159
    %p161 = scmp.eq.s32.totalorder %s25, 0
    %p162 = por %p160, %p161
    %s163 = ssub.s32 %s19, %s26
    %p164 = scmp.eq.s32.totalorder %s163, 0
    %s166 = sadd.s32 %s165, 1
    %s167 = scalar_select %p164, %s165, %s166
    %p170 = pneg %p164
    %p171 = scmp.eq.s32.totalorder %s19, 1
    %p172 = por %p170, %p171
    %p173 = scmp.ne.s32.totalorder %s165, %s168
    %p174 = scmp.eq.s32.totalorder %s19, 0
    %p175 = por %p173, %p174
    %p176 = scmp.ne.s32.totalorder %s165, %s168
    %p177 = scmp.eq.s32.totalorder %s24, 1
    %p178 = por %p176, %p177
    %p179 = scmp.ne.s32.totalorder %s168, %s169
    %p180 = scmp.eq.s32.totalorder %s24, 0
    %p181 = por %p179, %p180
    %p182 = scmp.ne.s32.totalorder %s168, %s169
    %p183 = scmp.eq.s32.totalorder %s25, 1
    %p184 = por %p182, %p183
    %p186 = scmp.ne.s32.totalorder %s169, %s185
    %p187 = scmp.eq.s32.totalorder %s25, 0
    %p188 = por %p186, %p187
    %s189 = ssub.s32 %s19, %s26
    %p190 = scmp.eq.s32.totalorder %s189, 0
    %s192 = sadd.s32 %s191, 1
    %s193 = scalar_select %p190, %s191, %s192
    %p196 = pneg %p190
    %p197 = scmp.eq.s32.totalorder %s19, 1
    %p198 = por %p196, %p197
    %p199 = scmp.ne.s32.totalorder %s191, %s194
    %p200 = scmp.eq.s32.totalorder %s19, 0
    %p201 = por %p199, %p200
    %p202 = scmp.ne.s32.totalorder %s191, %s194
    %p203 = scmp.eq.s32.totalorder %s24, 1
    %p204 = por %p202, %p203
    %p205 = scmp.ne.s32.totalorder %s194, %s195
    %p206 = scmp.eq.s32.totalorder %s24, 0
    %p207 = por %p205, %p206
    %p208 = scmp.ne.s32.totalorder %s194, %s195
    %p209 = scmp.eq.s32.totalorder %s25, 1
    %p210 = por %p208, %p209
    %p212 = scmp.ne.s32.totalorder %s195, %s211
    %p213 = scmp.eq.s32.totalorder %s25, 0
    %p214 = por %p212, %p213
    %s215 = ssub.s32 %s19, %s26
    %p216 = scmp.eq.s32.totalorder %s215, 0
    %s218 = sadd.s32 %s217, 1
    %s219 = scalar_select %p216, %s217, %s218
    %p222 = pneg %p216
    %p223 = scmp.eq.s32.totalorder %s19, 1
    %p224 = por %p222, %p223
    %p225 = scmp.ne.s32.totalorder %s217, %s220
    %p226 = scmp.eq.s32.totalorder %s19, 0
    %p227 = por %p225, %p226
    %p228 = scmp.ne.s32.totalorder %s217, %s220
    %p229 = scmp.eq.s32.totalorder %s24, 1
    %p230 = por %p228, %p229
    %p231 = scmp.ne.s32.totalorder %s220, %s221
    %p232 = scmp.eq.s32.totalorder %s24, 0
    %p233 = por %p231, %p232
    %p234 = scmp.ne.s32.totalorder %s220, %s221
    %p235 = scmp.eq.s32.totalorder %s25, 1
    %p236 = por %p234, %p235
    %p238 = scmp.ne.s32.totalorder %s221, %s237
    %p239 = scmp.eq.s32.totalorder %s25, 0
    %p240 = por %p238, %p239
    %s241 = ssub.s32 %s19, %s26
    %p242 = scmp.eq.s32.totalorder %s241, 0
    %s244 = sadd.s32 %s243, 1
    %s245 = scalar_select %p242, %s243, %s244
    %p248 = pneg %p242
    %p249 = scmp.eq.s32.totalorder %s19, 1
    %p250 = por %p248, %p249
    %p251 = scmp.ne.s32.totalorder %s243, %s246
    %p252 = scmp.eq.s32.totalorder %s19, 0
    %p253 = por %p251, %p252
    %p254 = scmp.ne.s32.totalorder %s243, %s246
    %p255 = scmp.eq.s32.totalorder %s24, 1
    %p256 = por %p254, %p255
    %p257 = scmp.ne.s32.totalorder %s246, %s247
    %p258 = scmp.eq.s32.totalorder %s24, 0
    %p259 = por %p257, %p258
    %p260 = scmp.ne.s32.totalorder %s246, %s247
    %p261 = scmp.eq.s32.totalorder %s25, 1
    %p262 = por %p260, %p261
    %p264 = scmp.ne.s32.totalorder %s247, %s263
    %p265 = scmp.eq.s32.totalorder %s25, 0
    %p266 = por %p264, %p265
    %s268 = sadd.s32 %s267, 1
    %p271 = scmp.eq.s32.totalorder %s19, 1
    %p272 = scmp.ne.s32.totalorder %s267, %s269
    %p273 = scmp.eq.s32.totalorder %s19, 0
    %p274 = por %p272, %p273
    %p275 = scmp.ne.s32.totalorder %s267, %s269
    %p276 = scmp.eq.s32.totalorder %s24, 1
    %p277 = por %p275, %p276
    %p278 = scmp.ne.s32.totalorder %s269, %s270
    %p279 = scmp.eq.s32.totalorder %s24, 0
    %p280 = por %p278, %p279
    %p281 = scmp.ne.s32.totalorder %s269, %s270
    %p282 = scmp.eq.s32.totalorder %s25, 1
    %p283 = por %p281, %p282
    %p285 = scmp.ne.s32.totalorder %s270, %s284
    %p286 = scmp.eq.s32.totalorder %s25, 0
    %p287 = por %p285, %p286
    %s288 = ssub.s32 %s19, %s26
    %p289 = scmp.eq.s32.totalorder %s288, 0
    %s291 = sadd.s32 %s290, 1
    %s292 = scalar_select %p289, %s290, %s291
    %p295 = pneg %p289
    %p296 = scmp.eq.s32.totalorder %s19, 1
    %p297 = por %p295, %p296
    %p298 = scmp.ne.s32.totalorder %s290, %s293
    %p299 = scmp.eq.s32.totalorder %s19, 0
    %p300 = por %p298, %p299
    %p301 = scmp.ne.s32.totalorder %s290, %s293
    %p302 = scmp.eq.s32.totalorder %s24, 1
    %p303 = por %p301, %p302
    %p304 = scmp.ne.s32.totalorder %s293, %s294
    %p305 = scmp.eq.s32.totalorder %s24, 0
    %p306 = por %p304, %p305
    %p307 = scmp.ne.s32.totalorder %s293, %s294
    %p308 = scmp.eq.s32.totalorder %s25, 1
    %p309 = por %p307, %p308
    %p311 = scmp.ne.s32.totalorder %s294, %s310
    %p312 = scmp.eq.s32.totalorder %s25, 0
    %p313 = por %p311, %p312
    %s314 = ssub.s32 %s19, %s26
    %p315 = scmp.eq.s32.totalorder %s314, 0
    %s317 = sadd.s32 %s316, 1
    %s318 = scalar_select %p315, %s316, %s317
    %p321 = pneg %p315
    %p322 = scmp.eq.s32.totalorder %s19, 1
    %p323 = por %p321, %p322
    %p324 = scmp.ne.s32.totalorder %s316, %s319
    %p325 = scmp.eq.s32.totalorder %s19, 0
    %p326 = por %p324, %p325
    %p327 = scmp.ne.s32.totalorder %s316, %s319
    %p328 = scmp.eq.s32.totalorder %s24, 1
    %p329 = por %p327, %p328
    %p330 = scmp.ne.s32.totalorder %s319, %s320
    %p331 = scmp.eq.s32.totalorder %s24, 0
    %p332 = por %p330, %p331
    %p333 = scmp.ne.s32.totalorder %s319, %s320
    %p334 = scmp.eq.s32.totalorder %s25, 1
    %p335 = por %p333, %p334
    %p337 = scmp.ne.s32.totalorder %s320, %s336
    %p338 = scmp.eq.s32.totalorder %s25, 0
    %p339 = por %p337, %p338
    %p340 = scmp.le.s32.totalorder 1, %s19
    %p341 = scmp.lt.s32.totalorder %s19, 3
    %p342 = pnand %p340, %p341
    %p343 = pneg %p342
    // Predicated region
    $region9: #{sim_model_forward.2} parent=5 // pred_check
      _
    $region10: #{sim_model_forward.2} parent=5 // pred_check_branch
      %345 = sbr.rel (%p342) target = $region12
    $region11: #{sim_model_forward.2} parent=5 // pred_region
      %s346 = ssub.s32 %s19, 1
      // Predicated region
      $region13: #{sim_model_forward.2} parent=11 // pred_check
        %p347 = pneg %p40
      $region14: #{sim_model_forward.2} parent=11 // pred_check_branch
        %349 = sbr.rel (%p347) target = $region16
      $region15: #{sim_model_forward.2} parent=11 // pred_region
        _
      $region16: #{sim_model_forward.2} parent=11 // pred_fallthru
        _
      // Predicated region
      $region17: #{sim_model_forward.2} parent=11 // pred_check
        %p350 = pneg %p61
      $region18: #{sim_model_forward.2} parent=11 // pred_check_branch
        %352 = sbr.rel (%p350) target = $region20
      $region19: #{sim_model_forward.2} parent=11 // pred_region
        _
      $region20: #{sim_model_forward.2} parent=11 // pred_fallthru
        _
      // Predicated region
      $region21: #{sim_model_forward.2} parent=11 // pred_check
        %p353 = pneg %p82
      $region22: #{sim_model_forward.2} parent=11 // pred_check_branch
        %355 = sbr.rel (%p353) target = $region24
      $region23: #{sim_model_forward.2} parent=11 // pred_region
        _
      $region24: #{sim_model_forward.2} parent=11 // pred_fallthru
        _
      // Predicated region
      $region25: #{sim_model_forward.2} parent=11 // pred_check
        %p356 = pneg %p103
      $region26: #{sim_model_forward.2} parent=11 // pred_check_branch
        %358 = sbr.rel (%p356) target = $region28
      $region27: #{sim_model_forward.2} parent=11 // pred_region
        _
      $region28: #{sim_model_forward.2} parent=11 // pred_fallthru
        _
    $region12: #{sim_model_forward.2} parent=5 // pred_fallthru
      _
    %p359 = scmp.lt.s32.totalorder %s19, 2
    // Predicated region
    $region29: #{sim_model_forward.2} parent=5 // pred_check
      %p360 = pneg %p359
    $region30: #{sim_model_forward.2} parent=5 // pred_check_branch
      %362 = sbr.rel (%p360) target = $region32
    $region31: #{sim_model_forward.2} parent=5 // pred_region
      // Predicated region
      $region33: #{sim_model_forward.2} parent=31 // pred_check
        %p363 = pneg %p123
      $region34: #{sim_model_forward.2} parent=31 // pred_check_branch
        %365 = sbr.rel (%p363) target = $region36
      $region35: #{sim_model_forward.2} parent=31 // pred_region
        %p366 = scmp.lt.s32.totalorder %s19, 1
        %s367 = scalar_select %p366, %s19, 1
        %s368 = scalar_lea.vmem %s4, %s367
      $region36: #{sim_model_forward.2} parent=31 // pred_fallthru
        _
      // Predicated region
      $region37: #{sim_model_forward.2} parent=31 // pred_check
        %p369 = pneg %p149
      $region38: #{sim_model_forward.2} parent=31 // pred_check_branch
        %371 = sbr.rel (%p369) target = $region40
      $region39: #{sim_model_forward.2} parent=31 // pred_region
        %p372 = scmp.lt.s32.totalorder %s19, 1
        %s373 = scalar_select %p372, %s19, 1
        %s374 = scalar_lea.vmem %s5, %s373
      $region40: #{sim_model_forward.2} parent=31 // pred_fallthru
        _
      // Predicated region
      $region41: #{sim_model_forward.2} parent=31 // pred_check
        %p375 = pneg %p175
      $region42: #{sim_model_forward.2} parent=31 // pred_check_branch
        %377 = sbr.rel (%p375) target = $region44
      $region43: #{sim_model_forward.2} parent=31 // pred_region
        %p378 = scmp.lt.s32.totalorder %s19, 1
        %s379 = scalar_select %p378, %s19, 1
        %s380 = smul.addr %s379, 4
        %s381 = smul.addr %s380, 4
        %s382 = scalar_lea.vmem %s6, %s381
      $region44: #{sim_model_forward.2} parent=31 // pred_fallthru
        _
      // Predicated region
      $region45: #{sim_model_forward.2} parent=31 // pred_check
        %p383 = pneg %p201
      $region46: #{sim_model_forward.2} parent=31 // pred_check_branch
        %385 = sbr.rel (%p383) target = $region48
      $region47: #{sim_model_forward.2} parent=31 // pred_region
        %p386 = scmp.lt.s32.totalorder %s19, 1
        %s387 = scalar_select %p386, %s19, 1
        %s388 = smul.addr %s387, 4
        %s389 = smul.addr %s388, 4
        %s390 = scalar_lea.vmem %s7, %s389
      $region48: #{sim_model_forward.2} parent=31 // pred_fallthru
        _
      // Predicated region
      $region49: #{sim_model_forward.2} parent=31 // pred_check
        %p391 = pneg %p227
      $region50: #{sim_model_forward.2} parent=31 // pred_check_branch
        %393 = sbr.rel (%p391) target = $region52
      $region51: #{sim_model_forward.2} parent=31 // pred_region
        %p394 = scmp.lt.s32.totalorder %s19, 1
        %s395 = scalar_select %p394, %s19, 1
        %s396 = smul.addr %s395, 4
        %s397 = smul.addr %s396, 4
        %s398 = scalar_lea.vmem %s8, %s397
      $region52: #{sim_model_forward.2} parent=31 // pred_fallthru
        _
      // Predicated region
      $region53: #{sim_model_forward.2} parent=31 // pred_check
        %p399 = pneg %p253
      $region54: #{sim_model_forward.2} parent=31 // pred_check_branch
        %401 = sbr.rel (%p399) target = $region56
      $region55: #{sim_model_forward.2} parent=31 // pred_region
        %p402 = scmp.lt.s32.totalorder %s19, 1
        %s403 = scalar_select %p402, %s19, 1
        %s404 = smul.addr %s403, 8
        %s405 = smul.addr %s404, 4
        %s406 = scalar_lea.vmem %s9, %s405
      $region56: #{sim_model_forward.2} parent=31 // pred_fallthru
        _
    $region32: #{sim_model_forward.2} parent=5 // pred_fallthru
      _
    %p407 = scmp.le.s32.totalorder 1, %s19
    %p408 = scmp.lt.s32.totalorder %s19, 3
    %p409 = pnand %p407, %p408
    %p410 = pneg %p409
    // Predicated region
    $region57: #{sim_model_forward.2} parent=5 // pred_check
      _
    $region58: #{sim_model_forward.2} parent=5 // pred_check_branch
      %412 = sbr.rel (%p409) target = $region60
    $region59: #{sim_model_forward.2} parent=5 // pred_region
      %s413 = ssub.s32 %s19, 1
      %p414 = pneg %p40
      %p415 = pneg %p37
      %p416 = pneg %p61
      %p417 = pneg %p58
      %p418 = pneg %p82
      %p419 = pneg %p79
      %p420 = pneg %p103
      %p421 = pneg %p100
      %p422 = scmp.lt.s32.totalorder %s24, 1
      %s423 = scalar_select %p422, %s24, 1
      %s424 = scalar_lea.vmem %s4, %s423
      %p425 = pneg %p129
      %p426 = pneg %p126
      %p427 = scmp.lt.s32.totalorder %s24, 1
      %s428 = scalar_select %p427, %s24, 1
      %s429 = scalar_lea.vmem %s5, %s428
      %p430 = pneg %p155
      %p431 = pneg %p152
      %p432 = scmp.lt.s32.totalorder %s24, 1
      %s433 = scalar_select %p432, %s24, 1
      %s434 = smul.addr %s433, 4
      %s435 = smul.addr %s434, 4
      %s436 = scalar_lea.vmem %s6, %s435
      %p437 = pneg %p181
      %p438 = pneg %p178
      %p439 = scmp.lt.s32.totalorder %s24, 1
      %s440 = scalar_select %p439, %s24, 1
      %s441 = smul.addr %s440, 4
      %s442 = smul.addr %s441, 4
      %s443 = scalar_lea.vmem %s7, %s442
      %p444 = pneg %p207
      %p445 = pneg %p204
      %p446 = scmp.lt.s32.totalorder %s24, 1
      %s447 = scalar_select %p446, %s24, 1
      %s448 = smul.addr %s447, 4
      %s449 = smul.addr %s448, 4
      %s450 = scalar_lea.vmem %s8, %s449
      %p451 = pneg %p233
      %p452 = pneg %p230
      %p453 = scmp.lt.s32.totalorder %s24, 1
      %s454 = scalar_select %p453, %s24, 1
      %s455 = smul.addr %s454, 8
      %s456 = smul.addr %s455, 4
      %s457 = scalar_lea.vmem %s9, %s456
      %p458 = pneg %p259
      %p459 = pneg %p256
      %p460 = pneg %p280
      %p461 = pneg %p277
      %p462 = pneg %p306
      %p463 = pneg %p303
      %p464 = scmp.lt.s32.totalorder %s24, 1
      %s465 = scalar_select %p464, %s24, 1
      %s466 = smul.addr %s465, 8
      %s467 = scalar_lea.vmem %s11, %s466
      %p468 = pneg %p332
      %p469 = pneg %p329
      %p470 = scmp.lt.s32.totalorder %s24, 1
      %s471 = scalar_select %p470, %s24, 1
      %s472 = smul.addr %s471, 8
      %s473 = scalar_lea.vmem %s12, %s472
      %p474 = scmp.lt.s32.totalorder %s24, 1
      %s475 = scalar_select %p474, %s24, 1
      %s476 = scalar_lea.vmem %s4, %s475
      %p477 = scmp.lt.s32.totalorder %s24, 1
      %s478 = scalar_select %p477, %s24, 1
      %s479 = scalar_lea.vmem %s5, %s478
      %p480 = scmp.lt.s32.totalorder %s24, 1
      %s481 = scalar_select %p480, %s24, 1
      %s482 = smul.addr %s481, 4
      %s483 = smul.addr %s482, 4
      %s484 = scalar_lea.vmem %s6, %s483
      %p485 = scmp.lt.s32.totalorder %s24, 1
      %s486 = scalar_select %p485, %s24, 1
      %s487 = smul.addr %s486, 4
      %s488 = smul.addr %s487, 4
      %s489 = scalar_lea.vmem %s7, %s488
      %p490 = scmp.lt.s32.totalorder %s24, 1
      %s491 = scalar_select %p490, %s24, 1
      %s492 = smul.addr %s491, 4
      %s493 = smul.addr %s492, 4
      %s494 = scalar_lea.vmem %s8, %s493
      %p495 = scmp.lt.s32.totalorder %s24, 1
      %s496 = scalar_select %p495, %s24, 1
      %s497 = smul.addr %s496, 8
      %s498 = smul.addr %s497, 4
      %s499 = scalar_lea.vmem %s9, %s498
      %p500 = scmp.lt.s32.totalorder %s24, 1
      %s501 = scalar_select %p500, %s24, 1
      %s502 = smul.addr %s501, 8
      %s503 = scalar_lea.vmem %s11, %s502
      %p504 = scmp.lt.s32.totalorder %s24, 1
      %s505 = scalar_select %p504, %s24, 1
      %s506 = smul.addr %s505, 8
      %s507 = scalar_lea.vmem %s12, %s506
      %p509 = scmp.eq.s32.totalorder %s24, 0
      // Predicated region
      $region61: #{sim_model_forward.2} parent=59 // pred_check
        %p510 = pneg %p509
      $region62: #{sim_model_forward.2} parent=59 // pred_check_branch
        %512 = sbr.rel (%p510) target = $region64
      $region63: #{sim_model_forward.2} parent=59 // pred_region
        %v513 = vld [vmem:[%s0] sm:$0xff]
        %vm514 = vcmask 261120
        %515 = vst.msk [vmem:[#allocation2] sm:$0xff] %vm514, %v513
      $region64: #{sim_model_forward.2} parent=59 // pred_fallthru
        _
      %v516 = vld [vmem:[#allocation2] sm:$0xff]
      %v517 = vld [vmem:[%s1] sm:$0xff]
      %v518 = vld [vmem:[%s2] sm:$0xff]
      %v519 = vld [vmem:[%s3] sm:$0xff]
      %v520 = vld [vmem:[%s476] sm:$0x1]
      %v521 = vmul.f32 %v516, %v516
      %vm522 = vcmask 261120
      %v523 = vsel %vm522, %v521, 0.0
      %524 = vadd.xlane.f32.xlu0 %v523
      %v525 = vpop.xlane.xlu0 %524
      %v526 = vrcp.pop 32.0
      %v527 = vmul.f32 32.0, %v526
      %v528 = vsub.f32 1.0, %v527
      %v529 = vmul.f32 %v526, %v528
      %v530 = vadd.f32 %v526, %v529
      %vm531 = vweird.f32 %v526
      %v532 = vsel %vm531, %v526, %v530
      %v533 = vmul.f32 %v525, %v532
      %v534 = vadd.f32 %v533, 1e-05
      %v535 = vrsqrt.pop %v534
      %v536 = vmul.f32 %v535, %v534
      %v537 = vmul.f32 %v536, %v535
      %v538 = vmul.f32 0.5, %v537
      %v539 = vsub.f32 1.5, %v538
      %v540 = vmul.f32 %v535, %v539
      %vm541 = vweird.f32 %v534
      %vm542 = vweird.f32 %v535
      %vm543 = vmor %vm541, %vm542
      %v544 = vsel %vm543, %v535, %v540
      %v545 = vmul.f32 %v516, %v544
      %v547 = vperm.slane %v520, 0
      %v549 = vmul.f32 %v545, %v547
      %v550 = vpack.c.bf16 %v549, %v549
      %v551 = vld [vmem:[%s484] sm:$0xf]
      %v552 = vld [vmem:[%s484 + $0x4] sm:$0xf]
      %v553 = vld [vmem:[%s484 + $0x8] sm:$0xf]
      %v554 = vld [vmem:[%s484 + $0xc] sm:$0xf]
      %v559 = vunpack.c.l.b16 %v551
      %v560 = vunpack.c.l.b16 %v552
      %v561 = vunpack.c.l.b16 %v553
      %v562 = vunpack.c.l.b16 %v554
      %v563 = vpack.c.b16 %v560, %v559
      %v564 = vpack.c.b16 %v562, %v561
      %v568 = vsel %vm522, %v550, 0
      %570 = vmatpush.bf16.msra.mxu0 0
      %571 = vmatpush.bf16.msra.mxu0 0
      %572 = vmatpush.bf16.msra.mxu0 0
      %573 = vmatpush.bf16.msra.mxu0 0
      %574 = vmatpush.bf16.msra.mxu0 0
      %575 = vmatpush.bf16.msra.mxu0 0
      %576 = vmatpush.bf16.msra.mxu0 %v564
      %577 = vmatpush.bf16.msra.mxu0 %v563
      %578 = vmatmul.bf16.gmra.mxu0 %v568
      %v579 = vpop.f32.mrf.mxu0
      %v580 = vadd.f32 0.0, %v579
      %v581 = vpop.f32.mrf.mxu0
      %582 = vdwg.mxu0
      %v583 = vmul.f32 %v580, %v517
      %585 = vrot.lane.b32.xlu0 %v518, 32
      %v586 = vpop.permute.xlu0 %585
      %v588 = vmul.f32 %v580, %v586
      %590 = vrot.lane.b32.xlu0 %v588, 96
      %v591 = vpop.permute.xlu0 %590
      %v593 = vadd.f32 %v583, %v591
      %595 = vrot.lane.b32.xlu0 %v517, 64
      %v596 = vpop.permute.xlu0 %595
      %v598 = vmul.f32 %v580, %v596
      %599 = vrot.lane.b32.xlu0 %v518, 80
      %v600 = vpop.permute.xlu0 %599
      %v602 = vmul.f32 %v580, %v600
      %604 = vrot.lane.b32.xlu0 %v602, 112
      %v605 = vpop.permute.xlu0 %604
      %v607 = vadd.f32 %v598, %v605
      %609 = vrot.lane.b32.xlu0 %v607, 64
      %v610 = vpop.permute.xlu0 %609
      %vm612 = vcmask 130048
      %613 = vst.msk [vmem:[%s503] sm:$0xff] %vm612, %v610
      %615 = vrot.lane.b32.xlu0 %v580, 32
      %v616 = vpop.permute.xlu0 %615
      %618 = vst.msk [vmem:[%s507] sm:$0xff] %vm612, %v616
      %620 = vrot.lane.b32.xlu0 %v593, 120
      %v621 = vpop.permute.xlu0 %620
      %623 = vrot.lane.b32.xlu0 %v593, 112
      %v624 = vpop.permute.xlu0 %623
      %626 = vrot.lane.b32.xlu0 %v593, 104
      %v627 = vpop.permute.xlu0 %626
      %v629 = vpack.c.bf16 %v593, %v593
      %v630 = vpack.c.bf16 %v621, %v621
      %v631 = vpack.c.bf16 %v624, %v624
      %v632 = vpack.c.bf16 %v627, %v627
      %633 = vrot.lane.b32.xlu0 %v607, 120
      %v634 = vpop.permute.xlu0 %633
      %v636 = vpack.c.bf16 %v607, %v607
      %v637 = vpack.c.bf16 %v634, %v634
      %638 = vrot.lane.b32.xlu0 %v580, 120
      %v639 = vpop.permute.xlu0 %638
      %v641 = vpack.c.bf16 %v580, %v580
      %v642 = vpack.c.bf16 %v639, %v639
      %v644 = vunpack.c.l.b16 %v636
      %v645 = vpack.c.b16 %v644, %v644
      %646 = vrot.lane.b32.xlu0 %v645, 64
      %v647 = vpop.permute.xlu0 %646
      %vm648 = vcmask 64512
      %v650 = vsel %vm648, %v629, 0
      %v653 = vsel %vm648, %v647, 0
      %655 = vmatpush.bf16.xpose.msra.mxu0 0
      %656 = vmatpush.bf16.xpose.msra.mxu0 0
      %657 = vmatpush.bf16.xpose.msra.mxu0 0
      %658 = vmatpush.bf16.xpose.msra.mxu0 0
      %659 = vmatpush.bf16.xpose.msra.mxu0 0
      %660 = vmatpush.bf16.xpose.msra.mxu0 0
      %661 = vmatpush.bf16.xpose.msra.mxu0 0
      %662 = vmatpush.bf16.xpose.msra.mxu0 %v653
      %663 = vmatmul.bf16.gmra.mxu0 %v650
      %v664 = vpop.f32.mrf.mxu0
      %v665 = vadd.f32 %v519, %v664
      %v666 = vpop.f32.mrf.mxu0
      %667 = vdwg.mxu0
      %v669 = vsel %vm648, %v630, 0
      %671 = vmatpush.bf16.xpose.msra.mxu0 0
      %672 = vmatpush.bf16.xpose.msra.mxu0 0
      %673 = vmatpush.bf16.xpose.msra.mxu0 0
      %674 = vmatpush.bf16.xpose.msra.mxu0 0
      %675 = vmatpush.bf16.xpose.msra.mxu0 0
      %676 = vmatpush.bf16.xpose.msra.mxu0 0
      %677 = vmatpush.bf16.xpose.msra.mxu0 0
      %678 = vmatpush.bf16.xpose.msra.mxu0 %v653
      %679 = vmatmul.bf16.gmra.mxu0 %v669
      %v680 = vpop.f32.mrf.mxu0
      %v681 = vadd.f32 %v519, %v680
      %v682 = vpop.f32.mrf.mxu0
      %683 = vdwg.mxu0
      %v685 = vunpack.c.l.b16 %v637
      %v686 = vpack.c.b16 %v685, %v685
      %687 = vrot.lane.b32.xlu0 %v686, 64
      %v688 = vpop.permute.xlu0 %687
      %v690 = vsel %vm648, %v631, 0
      %v693 = vsel %vm648, %v688, 0
      %695 = vmatpush.bf16.xpose.msra.mxu0 0
      %696 = vmatpush.bf16.xpose.msra.mxu0 0
      %697 = vmatpush.bf16.xpose.msra.mxu0 0
      %698 = vmatpush.bf16.xpose.msra.mxu0 0
      %699 = vmatpush.bf16.xpose.msra.mxu0 0
      %700 = vmatpush.bf16.xpose.msra.mxu0 0
      %701 = vmatpush.bf16.xpose.msra.mxu0 0
      %702 = vmatpush.bf16.xpose.msra.mxu0 %v693
      %703 = vmatmul.bf16.gmra.mxu0 %v690
      %v704 = vpop.f32.mrf.mxu0
      %v705 = vadd.f32 %v519, %v704
      %v706 = vpop.f32.mrf.mxu0
      %707 = vdwg.mxu0
      %v709 = vsel %vm648, %v632, 0
      %711 = vmatpush.bf16.xpose.msra.mxu0 0
      %712 = vmatpush.bf16.xpose.msra.mxu0 0
      %713 = vmatpush.bf16.xpose.msra.mxu0 0
      %714 = vmatpush.bf16.xpose.msra.mxu0 0
      %715 = vmatpush.bf16.xpose.msra.mxu0 0
      %716 = vmatpush.bf16.xpose.msra.mxu0 0
      %717 = vmatpush.bf16.xpose.msra.mxu0 0
      %718 = vmatpush.bf16.xpose.msra.mxu0 %v693
      %719 = vmatmul.bf16.gmra.mxu0 %v709
      %v720 = vpop.f32.mrf.mxu0
      %v721 = vadd.f32 %v519, %v720
      %v722 = vpop.f32.mrf.mxu0
      %723 = vdwg.mxu0
      %v724 = vsel %vm648, %v665, -inf
      %725 = vmax.xlane.f32.xlu0 %v724
      %v726 = vpop.xlane.xlu0 %725
      %v727 = vsel %vm648, %v681, -inf
      %728 = vmax.xlane.f32.xlu0 %v727
      %v729 = vpop.xlane.xlu0 %728
      %v730 = vsel %vm648, %v705, -inf
      %731 = vmax.xlane.f32.xlu0 %v730
      %v732 = vpop.xlane.xlu0 %731
      %v733 = vsel %vm648, %v721, -inf
      %734 = vmax.xlane.f32.xlu0 %v733
      %v735 = vpop.xlane.xlu0 %734
      %v736 = vsub.f32 %v665, %v726
      %v737 = vsub.f32 %v681, %v729
      %v738 = vsub.f32 %v705, %v732
      %v739 = vsub.f32 %v721, %v735
      %v740 = vmul.f32 %v736, 1.442695
      %v741 = vpow.pop %v740
      %v742 = vmul.f32 %v737, 1.442695
      %v743 = vpow.pop %v742
      %v744 = vmul.f32 %v738, 1.442695
      %v745 = vpow.pop %v744
      %v746 = vmul.f32 %v739, 1.442695
      %v747 = vpow.pop %v746
      %v748 = vsel %vm648, %v741, 0.0
      %749 = vadd.xlane.f32.xlu0 %v748
      %v750 = vpop.xlane.xlu0 %749
      %v751 = vsel %vm648, %v743, 0.0
      %752 = vadd.xlane.f32.xlu0 %v751
      %v753 = vpop.xlane.xlu0 %752
      %v754 = vsel %vm648, %v745, 0.0
      %755 = vadd.xlane.f32.xlu0 %v754
      %v756 = vpop.xlane.xlu0 %755
      %v757 = vsel %vm648, %v747, 0.0
      %758 = vadd.xlane.f32.xlu0 %v757
      %v759 = vpop.xlane.xlu0 %758
      %v760 = vrcp.pop %v750
      %v761 = vmul.f32 %v750, %v760
      %v762 = vsub.f32 1.0, %v761
      %v763 = vmul.f32 %v760, %v762
      %v764 = vadd.f32 %v760, %v763
      %vm765 = vweird.f32 %v750
      %vm766 = vweird.f32 %v760
      %vm767 = vmor %vm765, %vm766
      %v768 = vsel %vm767, %v760, %v764
      %v769 = vand.u32 2147483647, %v750
      %vm770 = vcmp.eq.f32.partialorder %v769, 8.507059e+37
      %v771 = vand.u32 %v750, 2147483648
      %v772 = vor.u32 1.1754944e-38, %v771
      %v773 = vsel %vm770, %v772, %v768
      %v774 = vmul.f32 %v741, %v773
      %v775 = vrcp.pop %v753
      %v776 = vmul.f32 %v753, %v775
      %v777 = vsub.f32 1.0, %v776
      %v778 = vmul.f32 %v775, %v777
      %v779 = vadd.f32 %v775, %v778
      %vm780 = vweird.f32 %v753
      %vm781 = vweird.f32 %v775
      %vm782 = vmor %vm780, %vm781
      %v783 = vsel %vm782, %v775, %v779
      %v784 = vand.u32 2147483647, %v753
      %vm785 = vcmp.eq.f32.partialorder %v784, 8.507059e+37
      %v786 = vand.u32 %v753, 2147483648
      %v787 = vor.u32 1.1754944e-38, %v786
      %v788 = vsel %vm785, %v787, %v783
      %v789 = vmul.f32 %v743, %v788
      %v790 = vrcp.pop %v756
      %v791 = vmul.f32 %v756, %v790
      %v792 = vsub.f32 1.0, %v791
      %v793 = vmul.f32 %v790, %v792
      %v794 = vadd.f32 %v790, %v793
      %vm795 = vweird.f32 %v756
      %vm796 = vweird.f32 %v790
      %vm797 = vmor %vm795, %vm796
      %v798 = vsel %vm797, %v790, %v794
      %v799 = vand.u32 2147483647, %v756
      %vm800 = vcmp.eq.f32.partialorder %v799, 8.507059e+37
      %v801 = vand.u32 %v756, 2147483648
      %v802 = vor.u32 1.1754944e-38, %v801
      %v803 = vsel %vm800, %v802, %v798
      %v804 = vmul.f32 %v745, %v803
      %v805 = vrcp.pop %v759
      %v806 = vmul.f32 %v759, %v805
      %v807 = vsub.f32 1.0, %v806
      %v808 = vmul.f32 %v805, %v807
      %v809 = vadd.f32 %v805, %v808
      %vm810 = vweird.f32 %v759
      %vm811 = vweird.f32 %v805
      %vm812 = vmor %vm810, %vm811
      %v813 = vsel %vm812, %v805, %v809
      %v814 = vand.u32 2147483647, %v759
      %vm815 = vcmp.eq.f32.partialorder %v814, 8.507059e+37
      %v816 = vand.u32 %v759, 2147483648
      %v817 = vor.u32 1.1754944e-38, %v816
      %v818 = vsel %vm815, %v817, %v813
      %v819 = vmul.f32 %v747, %v818
      %v820 = vpack.c.bf16 %v774, %v774
      %v821 = vpack.c.bf16 %v789, %v789
      %v822 = vpack.c.bf16 %v804, %v804
      %v823 = vpack.c.bf16 %v819, %v819
      %v825 = vunpack.c.l.b16 %v641
      %v826 = vpack.c.b16 %v825, %v825
      %827 = vrot.lane.b32.xlu0 %v826, 32
      %v828 = vpop.permute.xlu0 %827
      %v830 = vsel %vm648, %v820, 0
      %vm832 = vcmask 1043456
      %v834 = vsel %vm832, %v828, 0
      %836 = vmatpush.bf16.msra.mxu0 0
      %837 = vmatpush.bf16.msra.mxu0 0
      %838 = vmatpush.bf16.msra.mxu0 0
      %839 = vmatpush.bf16.msra.mxu0 0
      %840 = vmatpush.bf16.msra.mxu0 0
      %841 = vmatpush.bf16.msra.mxu0 0
      %842 = vmatpush.bf16.msra.mxu0 0
      %843 = vmatpush.bf16.msra.mxu0 %v834
      %844 = vmatmul.bf16.gmra.mxu0 %v830
      %v845 = vpop.f32.mrf.mxu0
      %v846 = vadd.f32 0.0, %v845
      %v847 = vpop.f32.mrf.mxu0
      %848 = vdwg.mxu0
      %v850 = vsel %vm648, %v821, 0
      %852 = vmatpush.bf16.msra.mxu0 0
      %853 = vmatpush.bf16.msra.mxu0 0
      %854 = vmatpush.bf16.msra.mxu0 0
      %855 = vmatpush.bf16.msra.mxu0 0
      %856 = vmatpush.bf16.msra.mxu0 0
      %857 = vmatpush.bf16.msra.mxu0 0
      %858 = vmatpush.bf16.msra.mxu0 0
      %859 = vmatpush.bf16.msra.mxu0 %v834
      %860 = vmatmul.bf16.gmra.mxu0 %v850
      %v861 = vpop.f32.mrf.mxu0
      %v862 = vadd.f32 0.0, %v861
      %v863 = vpop.f32.mrf.mxu0
      %864 = vdwg.mxu0
      %v866 = vunpack.c.l.b16 %v642
      %v867 = vpack.c.b16 %v866, %v866
      %868 = vrot.lane.b32.xlu0 %v867, 32
      %v869 = vpop.permute.xlu0 %868
      %v871 = vsel %vm648, %v822, 0
      %v874 = vsel %vm832, %v869, 0
      %876 = vmatpush.bf16.msra.mxu0 0
      %877 = vmatpush.bf16.msra.mxu0 0
      %878 = vmatpush.bf16.msra.mxu0 0
      %879 = vmatpush.bf16.msra.mxu0 0
      %880 = vmatpush.bf16.msra.mxu0 0
      %881 = vmatpush.bf16.msra.mxu0 0
      %882 = vmatpush.bf16.msra.mxu0 0
      %883 = vmatpush.bf16.msra.mxu0 %v874
      %884 = vmatmul.bf16.gmra.mxu0 %v871
      %v885 = vpop.f32.mrf.mxu0
      %v886 = vadd.f32 0.0, %v885
      %v887 = vpop.f32.mrf.mxu0
      %888 = vdwg.mxu0
      %v890 = vsel %vm648, %v823, 0
      %892 = vmatpush.bf16.msra.mxu0 0
      %893 = vmatpush.bf16.msra.mxu0 0
      %894 = vmatpush.bf16.msra.mxu0 0
      %895 = vmatpush.bf16.msra.mxu0 0
      %896 = vmatpush.bf16.msra.mxu0 0
      %897 = vmatpush.bf16.msra.mxu0 0
      %898 = vmatpush.bf16.msra.mxu0 0
      %899 = vmatpush.bf16.msra.mxu0 %v874
      %900 = vmatmul.bf16.gmra.mxu0 %v890
      %v901 = vpop.f32.mrf.mxu0
      %v902 = vadd.f32 0.0, %v901
      %v903 = vpop.f32.mrf.mxu0
      %904 = vdwg.mxu0
      %905 = vst.msk [vmem:[#allocation3] sm:$0xff] %vm648, %v846
      %907 = vrot.lane.b32.xlu0 %v862, 8
      %v908 = vpop.permute.xlu0 %907
      %vm910 = vcmask 130112
      %911 = vst.msk [vmem:[#allocation3] sm:$0xff] %vm910, %v908
      %913 = vrot.lane.b32.xlu0 %v886, 16
      %v914 = vpop.permute.xlu0 %913
      %vm916 = vcmask 195712
      %917 = vst.msk [vmem:[#allocation3] sm:$0xff] %vm916, %v914
      %919 = vrot.lane.b32.xlu0 %v902, 24
      %v920 = vpop.permute.xlu0 %919
      %vm922 = vcmask 261312
      %923 = vst.msk [vmem:[#allocation3] sm:$0xff] %vm922, %v920
      %v924 = vld [vmem:[#allocation3] sm:$0xff]
      %v925 = vpack.c.bf16 %v924, %v924
      %v926 = vld [vmem:[%s489] sm:$0xf]
      %v927 = vld [vmem:[%s489 + $0x4] sm:$0xf]
      %v928 = vld [vmem:[%s489 + $0x8] sm:$0xf]
      %v929 = vld [vmem:[%s489 + $0xc] sm:$0xf]
      %v934 = vunpack.c.l.b16 %v926
      %v935 = vunpack.c.l.b16 %v927
      %v936 = vunpack.c.l.b16 %v928
      %v937 = vunpack.c.l.b16 %v929
      %v938 = vpack.c.b16 %v935, %v934
      %v939 = vpack.c.b16 %v937, %v936
      %v943 = vsel %vm522, %v925, 0
      %945 = vmatpush.bf16.msra.mxu0 0
      %946 = vmatpush.bf16.msra.mxu0 0
      %947 = vmatpush.bf16.msra.mxu0 0
      %948 = vmatpush.bf16.msra.mxu0 0
      %949 = vmatpush.bf16.msra.mxu0 0
      %950 = vmatpush.bf16.msra.mxu0 0
      %951 = vmatpush.bf16.msra.mxu0 %v939
      %952 = vmatpush.bf16.msra.mxu0 %v938
      %953 = vmatmul.bf16.gmra.mxu0 %v943
      %v954 = vpop.f32.mrf.mxu0
      %v955 = vadd.f32 0.0, %v954
      %v956 = vpop.f32.mrf.mxu0
      %957 = vdwg.mxu0
      %v958 = vadd.f32 %v516, %v955
      %v959 = vld [vmem:[%s479] sm:$0x1]
      %v960 = vmul.f32 %v958, %v958
      %v961 = vsel %vm522, %v960, 0.0
      %962 = vadd.xlane.f32.xlu0 %v961
      %v963 = vpop.xlane.xlu0 %962
      %v964 = vmul.f32 %v963, %v532
      %v965 = vadd.f32 %v964, 1e-05
      %v966 = vrsqrt.pop %v965
      %v967 = vmul.f32 %v966, %v965
      %v968 = vmul.f32 %v967, %v966
      %v969 = vmul.f32 0.5, %v968
      %v970 = vsub.f32 1.5, %v969
      %v971 = vmul.f32 %v966, %v970
      %vm972 = vweird.f32 %v965
      %vm973 = vweird.f32 %v966
      %vm974 = vmor %vm972, %vm973
      %v975 = vsel %vm974, %v966, %v971
      %v976 = vmul.f32 %v958, %v975
      %v978 = vperm.slane %v959, 0
      %v980 = vmul.f32 %v976, %v978
      %v981 = vpack.c.bf16 %v980, %v980
      %v982 = vld [vmem:[%s494] sm:$0xf]
      %v983 = vld [vmem:[%s494 + $0x4] sm:$0xf]
      %v984 = vld [vmem:[%s494 + $0x8] sm:$0xf]
      %v985 = vld [vmem:[%s494 + $0xc] sm:$0xf]
      %v990 = vunpack.c.l.b16 %v982
      %v991 = vunpack.c.l.b16 %v983
      %v992 = vunpack.c.l.b16 %v984
      %v993 = vunpack.c.l.b16 %v985
      %v994 = vpack.c.b16 %v991, %v990
      %v995 = vpack.c.b16 %v993, %v992
      %v999 = vsel %vm522, %v981, 0
      %1001 = vmatpush.bf16.msra.mxu0 0
      %1002 = vmatpush.bf16.msra.mxu0 0
      %1003 = vmatpush.bf16.msra.mxu0 0
      %1004 = vmatpush.bf16.msra.mxu0 0
      %1005 = vmatpush.bf16.msra.mxu0 0
      %1006 = vmatpush.bf16.msra.mxu0 0
      %1007 = vmatpush.bf16.msra.mxu0 %v995
      %1008 = vmatpush.bf16.msra.mxu0 %v994
      %1009 = vmatmul.bf16.gmra.mxu0 %v999
      %v1010 = vpop.f32.mrf.mxu0
      %v1011 = vadd.f32 0.0, %v1010
      %v1012 = vpop.f32.mrf.mxu0
      %1013 = vdwg.mxu0
      %v1014 = vxor.u32 %v1011, 2147483648
      %v1015 = vmul.f32 %v1014, 1.442695
      %v1016 = vpow.pop %v1015
      %v1017 = vadd.f32 %v1016, 1.0
      %v1018 = vrcp.pop %v1017
      %v1019 = vmul.f32 %v1017, %v1018
      %v1020 = vsub.f32 1.0, %v1019
      %v1021 = vmul.f32 %v1018, %v1020
      %v1022 = vadd.f32 %v1018, %v1021
      %vm1023 = vweird.f32 %v1017
      %vm1024 = vweird.f32 %v1018
      %vm1025 = vmor %vm1023, %vm1024
      %v1026 = vsel %vm1025, %v1018, %v1022
      %v1027 = vand.u32 2147483647, %v1017
      %vm1028 = vcmp.eq.f32.partialorder %v1027, 8.507059e+37
      %v1029 = vand.u32 %v1017, 2147483648
      %v1030 = vor.u32 1.1754944e-38, %v1029
      %v1031 = vsel %vm1028, %v1030, %v1026
      %v1032 = vmul.f32 1.0, %v1031
      %v1033 = vmul.f32 %v1011, %v1032
      %1035 = vrot.lane.b32.xlu0 %v1011, 64
      %v1036 = vpop.permute.xlu0 %1035
      %v1038 = vmul.f32 %v1033, %v1036
      %v1039 = vpack.c.bf16 %v1038, %v1038
      %v1040 = vld [vmem:[%s499] sm:$0xf]
      %v1041 = vld [vmem:[%s499 + $0x4] sm:$0xf]
      %v1042 = vld [vmem:[%s499 + $0x8] sm:$0xf]
      %v1043 = vld [vmem:[%s499 + $0xc] sm:$0xf]
      %v1044 = vld [vmem:[%s499 + $0x10] sm:$0xf]
      %v1045 = vld [vmem:[%s499 + $0x14] sm:$0xf]
      %v1046 = vld [vmem:[%s499 + $0x18] sm:$0xf]
      %v1047 = vld [vmem:[%s499 + $0x1c] sm:$0xf]
      %v1056 = vunpack.c.l.b16 %v1040
      %v1057 = vunpack.c.l.b16 %v1041
      %v1058 = vunpack.c.l.b16 %v1042
      %v1059 = vunpack.c.l.b16 %v1043
      %v1060 = vunpack.c.l.b16 %v1044
      %v1061 = vunpack.c.l.b16 %v1045
      %v1062 = vunpack.c.l.b16 %v1046
      %v1063 = vunpack.c.l.b16 %v1047
      %v1064 = vpack.c.b16 %v1057, %v1056
      %v1065 = vpack.c.b16 %v1059, %v1058
      %v1066 = vpack.c.b16 %v1061, %v1060
      %v1067 = vpack.c.b16 %v1063, %v1062
      %vm1072 = vcmask 523264
      %v1074 = vsel %vm1072, %v1039, 0
      %1076 = vmatpush.bf16.msra.mxu0 0
      %1077 = vmatpush.bf16.msra.mxu0 0
      %1078 = vmatpush.bf16.msra.mxu0 0
      %1079 = vmatpush.bf16.msra.mxu0 0
      %1080 = vmatpush.bf16.msra.mxu0 %v1067
      %1081 = vmatpush.bf16.msra.mxu0 %v1066
      %1082 = vmatpush.bf16.msra.mxu0 %v1065
      %1083 = vmatpush.bf16.msra.mxu0 %v1064
      %1084 = vmatmul.bf16.gmra.mxu0 %v1074
      %v1085 = vpop.f32.mrf.mxu0
      %v1086 = vadd.f32 0.0, %v1085
      %v1087 = vpop.f32.mrf.mxu0
      %1088 = vdwg.mxu0
      %v1089 = vadd.f32 %v958, %v1086
      %1090 = vst.msk [vmem:[#allocation2] sm:$0xff] %vm522, %v1089
      %p1091 = scmp.eq.s32.totalorder %s24, 1
      // Predicated region
      $region65: #{sim_model_forward.2} parent=59 // pred_check
        %p1092 = pneg %p1091
      $region66: #{sim_model_forward.2} parent=59 // pred_check_branch
        %1094 = sbr.rel (%p1092) target = $region68
      $region67: #{sim_model_forward.2} parent=59 // pred_region
        %1095 = vst.msk [vmem:[%s10] sm:$0xff] %vm522, %v1089
      $region68: #{sim_model_forward.2} parent=59 // pred_fallthru
        _
      %p1096 = scmp.lt.s32.totalorder %s24, 1
      %s1097 = scalar_select %p1096, %s24, 1
      %s1098 = smul.addr %s1097, 8
      %s1099 = scalar_lea.vmem %s11, %s1098
      %p1100 = scmp.lt.s32.totalorder %s24, 1
      %s1101 = scalar_select %p1100, %s24, 1
      %s1102 = smul.addr %s1101, 8
      %s1103 = scalar_lea.vmem %s12, %s1102
      // Predicated region
      $region69: #{sim_model_forward.2} parent=59 // pred_check
        %p1104 = pneg %p277
      $region70: #{sim_model_forward.2} parent=59 // pred_check_branch
        %1106 = sbr.rel (%p1104) target = $region72
      $region71: #{sim_model_forward.2} parent=59 // pred_region
        _
      $region72: #{sim_model_forward.2} parent=59 // pred_fallthru
        _
      // Predicated region
      $region73: #{sim_model_forward.2} parent=59 // pred_check
        %p1107 = pneg %p303
      $region74: #{sim_model_forward.2} parent=59 // pred_check_branch
        %1109 = sbr.rel (%p1107) target = $region76
      $region75: #{sim_model_forward.2} parent=59 // pred_region
        _
      $region76: #{sim_model_forward.2} parent=59 // pred_fallthru
        _
      // Predicated region
      $region77: #{sim_model_forward.2} parent=59 // pred_check
        %p1110 = pneg %p329
      $region78: #{sim_model_forward.2} parent=59 // pred_check_branch
        %1112 = sbr.rel (%p1110) target = $region80
      $region79: #{sim_model_forward.2} parent=59 // pred_region
        _
      $region80: #{sim_model_forward.2} parent=59 // pred_fallthru
        _
      // Predicated region
      $region81: #{sim_model_forward.2} parent=59 // pred_check
        %p1113 = pneg %p277
      $region82: #{sim_model_forward.2} parent=59 // pred_check_branch
        %1115 = sbr.rel (%p1113) target = $region84
      $region83: #{sim_model_forward.2} parent=59 // pred_region
        _
      $region84: #{sim_model_forward.2} parent=59 // pred_fallthru
        _
    $region60: #{sim_model_forward.2} parent=5 // pred_fallthru
      _
    %p1116 = scmp.le.s32.totalorder 2, %s19
    // Predicated region
    $region85: #{sim_model_forward.2} parent=5 // pred_check
      %p1117 = pneg %p1116
    $region86: #{sim_model_forward.2} parent=5 // pred_check_branch
      %1119 = sbr.rel (%p1117) target = $region88
    $region87: #{sim_model_forward.2} parent=5 // pred_region
      %s1120 = ssub.s32 %s19, 2
      // Predicated region
      $region89: #{sim_model_forward.2} parent=87 // pred_check
        %p1121 = pneg %p309
      $region90: #{sim_model_forward.2} parent=87 // pred_check_branch
        %1123 = sbr.rel (%p1121) target = $region92
      $region91: #{sim_model_forward.2} parent=87 // pred_region
        %p1124 = scmp.lt.s32.totalorder %s25, 1
        %s1125 = scalar_select %p1124, %s25, 1
        %s1126 = smul.addr %s1125, 8
        %s1127 = scalar_lea.vmem %s11, %s1126
      $region92: #{sim_model_forward.2} parent=87 // pred_fallthru
        _
      // Predicated region
      $region93: #{sim_model_forward.2} parent=87 // pred_check
        %p1128 = pneg %p335
      $region94: #{sim_model_forward.2} parent=87 // pred_check_branch
        %1130 = sbr.rel (%p1128) target = $region96
      $region95: #{sim_model_forward.2} parent=87 // pred_region
        %p1131 = scmp.lt.s32.totalorder %s25, 1
        %s1132 = scalar_select %p1131, %s25, 1
        %s1133 = smul.addr %s1132, 8
        %s1134 = scalar_lea.vmem %s12, %s1133
      $region96: #{sim_model_forward.2} parent=87 // pred_fallthru
        _
    $region88: #{sim_model_forward.2} parent=5 // pred_fallthru
      _
  $region6: #{sim_model_forward.2} parent=0 // loop_footer
    %s23 = sadd.s32 1, %s19
  $region7: #{sim_model_forward.2} parent=0 // loop_footer_branch
    %18 = sbr.rel target = $region3
  $region8: #{sim_model_forward.2} parent=0 // loop_exit
    _

</llo_original>
